<compile_context>
chip_gen: v7x
topology: tpu7x:2x2x1
jax: 0.10.0
libtpu: 0.0.40
codegen_flags: <defaults>
</compile_context>

<pallas_src>
import math
import numpy as np
import jax
import jax.numpy as jnp
from jax.experimental import pallas as pl
from jax.experimental.pallas import tpu as pltpu


def _pick_batch_tile(B, Lq, target_rows=256):
    """Pick the per-step batch tile Bt.

    Prefers (a) >= 2 grid steps (keeps v7x's second TensorCore busy) and
    (b) Bt*Lq >= target_rows so the folded (Bt*Lq, D) matmuls feed the MXU
    with enough rows (256 for v6e/v7x's 256-wide MXU; also fine on v5e).
    """
    divisors = [d for d in range(1, B + 1) if B % d == 0]
    for bt in divisors:                       # smallest tile meeting both goals
        if bt < B and bt * Lq >= target_rows:
            return bt
    for bt in divisors:                       # meet the row target even if 1 step
        if bt * Lq >= target_rows:
            return bt
    two_step = [d for d in divisors if d < B]  # can't reach target: keep 2 steps
    return max(two_step) if two_step else B


def make_encoder_layer_kernel(Bt, Lq, Lp, Ll, Lm, D, H, d_ff):
    dk = D // H
    Lkv = Lp + Ll + Lm
    R = Bt * Lq       # query rows per grid step
    Rk = Bt * Lkv     # key/value rows per grid step
    gelu_c = math.sqrt(2.0 / math.pi)

    def kernel(inp_ref, plan_ref, log_ref, met_ref, kmask_ref, vecs_ref, b1_ref,
               wq_ref, wkv_ref, wo_ref, w1_ref, w2_ref,
               out_ref, attn_ref, ctx_sc):
        # Packed (9, D) f32 rows: ln1_g, ln1_b, bq(*scale), bk, bv, bo, ln2_g, ln2_b, b2
        vecs = vecs_ref[...]
        ln1_g, ln1_b = vecs[0:1], vecs[1:2]
        bq, bk, bv, bo = vecs[2:3], vecs[3:4], vecs[4:5], vecs[5:6]
        ln2_g, ln2_b, b2 = vecs[6:7], vecs[7:8], vecs[8:9]

        x2 = inp_ref[...].reshape(R, D)                       # (R, D) f32

        # ---- outer LayerNorm (Annotated-Transformer style: unbiased std, /(std+eps)) ----
        mean = jnp.mean(x2, axis=-1, keepdims=True)
        diff = x2 - mean
        std = jnp.sqrt(jnp.sum(diff * diff, axis=-1, keepdims=True) / (D - 1))
        xn = ln1_g * diff * (1.0 / (std + 1e-6)) + ln1_b

        # ---- projections (bf16 operands, f32 accumulation on the MXU) ----
        # 1/sqrt(dk) is already folded into wq / bq (wrapper).
        q2 = jnp.dot(xn.astype(jnp.bfloat16), wq_ref[...],
                     preferred_element_type=jnp.float32) + bq             # (R, D)

        # kv streams concatenated in VMEM (no HBM round trip in the wrapper).
        kv3 = jnp.concatenate([plan_ref[...], log_ref[...], met_ref[...]], axis=1)
        kv2 = kv3.reshape(Rk, D).astype(jnp.bfloat16)                      # (Rk, D)
        kvp = jnp.dot(kv2, wkv_ref[...],
                      preferred_element_type=jnp.float32)                  # (Rk, 2D)
        k2 = kvp[:, :D] + bk
        v2 = kvp[:, D:] + bv

        q2b = q2.astype(jnp.bfloat16)
        k2b = k2.astype(jnp.bfloat16)
        v2b = v2.astype(jnp.bfloat16)

        # Additive key bias, hoisted out of the head loop.  (Bt, 1, Lkv)
        bias = (1.0 - kmask_ref[...]) * (-1e9)

        # ---- multi-head attention: one static loop over heads, no stacks/concats ----
        for h in range(H):
            sl = slice(h * dk, (h + 1) * dk)
            qh = q2b[:, sl].reshape(Bt, Lq, dk)
            kh = k2b[:, sl].reshape(Bt, Lkv, dk)
            vh = v2b[:, sl].reshape(Bt, Lkv, dk)

            s = jnp.einsum('bqd,bkd->bqk', qh, kh,
                           preferred_element_type=jnp.float32)             # (Bt, Lq, Lkv)
            s = s + bias
            m = jnp.max(s, axis=-1, keepdims=True)
            e = jnp.exp(s - m)
            p = e * pl.reciprocal(jnp.sum(e, axis=-1, keepdims=True), approx=True)

            # bf16 probs output: half the HBM writeback of the (B,H,Lq,Lkv) tensor.
            attn_ref[:, h:h + 1, :, :] = p[:, None, :, :].astype(attn_ref.dtype)

            c = jnp.einsum('bqk,bkd->bqd', p.astype(jnp.bfloat16), vh,
                           preferred_element_type=jnp.float32)             # (Bt, Lq, dk)
            ctx_sc[:, sl] = c.reshape(R, dk)      # assemble context in VMEM scratch

        ctx2 = jnp.dot(ctx_sc[...].astype(jnp.bfloat16), wo_ref[...],
                       preferred_element_type=jnp.float32) + bo
        out1 = ctx2 + x2   # dropout == identity at inference

        # ---- PositionwiseFeedForward: LN(eps=1e-6) -> Linear -> GELU(tanh) -> Linear -> +res ----
        mean2 = jnp.mean(out1, axis=-1, keepdims=True)
        d2 = out1 - mean2
        var2 = jnp.mean(d2 * d2, axis=-1, keepdims=True)
        yn = ln2_g * d2 * jax.lax.rsqrt(var2 + 1e-6) + ln2_b
        h1 = jnp.dot(yn.astype(jnp.bfloat16), w1_ref[...],
                     preferred_element_type=jnp.float32) + b1_ref[...]
        g = 0.5 * h1 * (1.0 + jnp.tanh(gelu_c * (h1 + 0.044715 * h1 * h1 * h1)))
        h2 = jnp.dot(g.astype(jnp.bfloat16), w2_ref[...],
                     preferred_element_type=jnp.float32) + b2
        out_ref[...] = (h2 + out1).reshape(Bt, Lq, D)

    return kernel


def transformer_encoder_layer(inputs, plan, log, metrics, plan_mask, params, heads):
    B, Lq, D = inputs.shape
    Lp, Ll, Lm = plan.shape[1], log.shape[1], metrics.shape[1]
    Lkv = Lp + Ll + Lm
    d_ff = params["w1"].shape[1]
    assert D % heads == 0
    dk = D // heads
    scale = 1.0 / math.sqrt(dk)

    Bt = _pick_batch_tile(B, Lq)
    grid = (B // Bt,)
    R = Bt * Lq

    # ---- wrapper-side packing / casting (tiny, one-time HBM ops) ----
    # Attention scale folded into the query projection weights/bias.
    wq = (params["wq"] * scale).astype(jnp.bfloat16)
    wkv = jnp.concatenate([params["wk"], params["wv"]], axis=1).astype(jnp.bfloat16)
    wo = params["wo"].astype(jnp.bfloat16)
    w1 = params["w1"].astype(jnp.bfloat16)
    w2 = params["w2"].astype(jnp.bfloat16)
    vecs = jnp.concatenate(
        [params["ln1_g"], params["ln1_b"],
         params["bq"] * scale, params["bk"], params["bv"], params["bo"],
         params["ln2_g"], params["ln2_b"], params["b2"]],
        axis=0).astype(jnp.float32)                                            # (9, D)
    b1 = params["b1"].astype(jnp.float32)                                      # (1, d_ff)
    # plan_mask only masks the plan keys; log/metrics keys are always valid.
    # This pad is B*Lkv*4 bytes (negligible) -- the large data-stream concat now
    # happens inside the kernel in VMEM.
    key_mask = jnp.concatenate(
        [plan_mask.astype(jnp.float32), jnp.ones((B, 1, Ll + Lm), jnp.float32)],
        axis=-1)                                                               # (B, 1, Lkv)

    kernel = make_encoder_layer_kernel(Bt, Lq, Lp, Ll, Lm, D, heads, d_ff)

    def batched(tail):
        n0 = len(tail)
        return pl.BlockSpec((Bt,) + tail, lambda i: (i,) + (0,) * n0)

    def const(shape):
        n = len(shape)
        return pl.BlockSpec(shape, lambda i: (0,) * n)

    in_specs = [
        batched((Lq, D)),        # inputs
        batched((Lp, D)),        # plan
        batched((Ll, D)),        # log
        batched((Lm, D)),        # metrics
        batched((1, Lkv)),       # key mask (plan_mask padded with ones)
        const((9, D)),           # packed LN gammas/betas + biases
        const((1, d_ff)),        # b1
        const((D, D)),           # wq (pre-scaled)
        const((D, 2 * D)),       # wk|wv fused
        const((D, D)),           # wo
        const((D, d_ff)),        # w1
        const((d_ff, D)),        # w2
    ]
    out_specs = [
        batched((Lq, D)),
        pl.BlockSpec((Bt, heads, Lq, Lkv), lambda i: (i, 0, 0, 0)),
    ]
    out_shape = (
        jax.ShapeDtypeStruct((B, Lq, D), jnp.float32),
        jax.ShapeDtypeStruct((B, heads, Lq, Lkv), jnp.bfloat16),
    )

    out, attn = pl.pallas_call(
        kernel,
        out_shape=out_shape,
        grid_spec=pltpu.PrefetchScalarGridSpec(
            num_scalar_prefetch=0,
            grid=grid,
            in_specs=in_specs,
            out_specs=out_specs,
            scratch_shapes=[pltpu.VMEM((R, D), jnp.float32)],   # per-step context
        ),
        compiler_params=pltpu.CompilerParams(
            dimension_semantics=("parallel",),
            vmem_limit_bytes=32 * 1024 * 1024),
    )(inputs, plan, log, metrics, key_mask, vecs, b1, wq, wkv, wo, w1, w2)
    return out, attn


def reference_forward(inputs, plan, log, metrics, plan_mask, params, H):
    """Pure-JAX f32 reference of the same math (for a correctness check)."""
    B, Lq, D = inputs.shape
    dk = D // H
    Ll, Lm = log.shape[1], metrics.shape[1]
    key_mask = jnp.concatenate(
        [plan_mask, jnp.ones((B, 1, Ll + Lm), jnp.float32)], axis=-1)
    mean = inputs.mean(-1, keepdims=True)
    diff = inputs - mean
    std = jnp.sqrt((diff ** 2).sum(-1, keepdims=True) / (D - 1))
    xn = params["ln1_g"] * diff / (std + 1e-6) + params["ln1_b"]
    kv = jnp.concatenate([plan, log, metrics], axis=1)
    q = xn @ params["wq"] + params["bq"]
    k = kv @ params["wk"] + params["bk"]
    v = kv @ params["wv"] + params["bv"]
    Lkv = k.shape[1]
    qh = q.reshape(B, Lq, H, dk).transpose(0, 2, 1, 3)
    kh = k.reshape(B, Lkv, H, dk).transpose(0, 2, 1, 3)
    vh = v.reshape(B, Lkv, H, dk).transpose(0, 2, 1, 3)
    scores = jnp.einsum("bhqd,bhkd->bhqk", qh, kh) / math.sqrt(dk)
    scores = scores + (1.0 - key_mask[:, None, :, :]) * (-1e9)
    p = jax.nn.softmax(scores, axis=-1)
    ctx = jnp.einsum("bhqk,bhkd->bhqd", p, vh).transpose(0, 2, 1, 3).reshape(B, Lq, D)
    ctx = ctx @ params["wo"] + params["bo"]
    out1 = ctx + inputs
    mean2 = out1.mean(-1, keepdims=True)
    d2 = out1 - mean2
    var2 = (d2 ** 2).mean(-1, keepdims=True)
    yn = params["ln2_g"] * d2 * jax.lax.rsqrt(var2 + 1e-6) + params["ln2_b"]
    h1 = yn @ params["w1"] + params["b1"]
    g = 0.5 * h1 * (1.0 + jnp.tanh(math.sqrt(2.0 / math.pi) * (h1 + 0.044715 * h1 ** 3)))
    out = g @ params["w2"] + params["b2"] + out1
    return out, p


if __name__ == "__main__":
    B, L, D, H, d_ff = 2, 8, 32, 4, 64

    key = jax.random.PRNGKey(0)
    ks = jax.random.split(key, 12)

    inputs = jax.random.normal(ks[0], (B, L, D), jnp.float32)
    plan = jax.random.normal(ks[1], (B, L, D), jnp.float32)
    log = jax.random.normal(ks[2], (B, L, D), jnp.float32)
    metrics = jax.random.normal(ks[3], (B, L, D), jnp.float32)

    # plan_mask masks the last two plan positions of batch element 1.
    plan_mask = jnp.ones((B, 1, L), jnp.float32).at[1, 0, -2:].set(0.0)

    s = 0.1
    params = {
        "ln1_g": jnp.ones((1, D), jnp.float32),
        "ln1_b": jnp.zeros((1, D), jnp.float32),
        "wq": s * jax.random.normal(ks[4], (D, D), jnp.float32),
        "bq": jnp.zeros((1, D), jnp.float32),
        "wk": s * jax.random.normal(ks[5], (D, D), jnp.float32),
        "bk": jnp.zeros((1, D), jnp.float32),
        "wv": s * jax.random.normal(ks[6], (D, D), jnp.float32),
        "bv": jnp.zeros((1, D), jnp.float32),
        "wo": s * jax.random.normal(ks[7], (D, D), jnp.float32),
        "bo": jnp.zeros((1, D), jnp.float32),
        "ln2_g": jnp.ones((1, D), jnp.float32),
        "ln2_b": jnp.zeros((1, D), jnp.float32),
        "w1": s * jax.random.normal(ks[8], (D, d_ff), jnp.float32),
        "b1": jnp.zeros((1, d_ff), jnp.float32),
        "w2": s * jax.random.normal(ks[9], (d_ff, D), jnp.float32),
        "b2": jnp.zeros((1, D), jnp.float32),
    }

    out, attn = transformer_encoder_layer(inputs, plan, log, metrics, plan_mask, params, H)
    out = jax.block_until_ready(out)
    attn = jax.block_until_ready(attn)

    ref_out, ref_attn = reference_forward(inputs, plan, log, metrics, plan_mask, params, H)
    # bf16 matmul operands (f32 accumulation) + bf16 probs output vs. pure-f32
    # reference: tolerance 1e-2 (observed error is a few 1e-3).
    np.testing.assert_allclose(np.asarray(out), np.asarray(ref_out), rtol=1e-2, atol=1e-2)
    np.testing.assert_allclose(np.asarray(attn).astype(np.float32), np.asarray(ref_attn),
                               rtol=1e-2, atol=1e-2)

    print("KERNEL_OK")
</pallas_src>

<mosaic_0001>
module attributes {stable_mosaic.version = 11 : i64} {
  func.func @kernel(%arg0: i32, %arg1: memref<1x8x32xf32, #tpu.memory_space<vmem>>, %arg2: memref<1x8x32xf32, #tpu.memory_space<vmem>>, %arg3: memref<1x8x32xf32, #tpu.memory_space<vmem>>, %arg4: memref<1x8x32xf32, #tpu.memory_space<vmem>>, %arg5: memref<1x1x24xf32, #tpu.memory_space<vmem>>, %arg6: memref<9x32xf32, #tpu.memory_space<vmem>>, %arg7: memref<1x64xf32, #tpu.memory_space<vmem>>, %arg8: memref<32x32xbf16, #tpu.memory_space<vmem>>, %arg9: memref<32x64xbf16, #tpu.memory_space<vmem>>, %arg10: memref<32x32xbf16, #tpu.memory_space<vmem>>, %arg11: memref<32x64xbf16, #tpu.memory_space<vmem>>, %arg12: memref<64x32xbf16, #tpu.memory_space<vmem>>, %arg13: memref<1x8x32xf32, #tpu.memory_space<vmem>>, %arg14: memref<1x4x8x24xbf16, #tpu.memory_space<vmem>>, %arg15: memref<8x32xf32, #tpu.memory_space<vmem>>) attributes {dimension_semantics = [#tpu.dimension_semantics<parallel>], iteration_bounds = array<i64: 2>, scalar_prefetch = 0 : i64, scratch_operands = 1 : i64, tpu.core_type = #tpu.core_type<tc>, window_params = [{transform_indices = @transform_0, window_bounds = array<i64: 1, 8, 32>}, {transform_indices = @transform_1, window_bounds = array<i64: 1, 8, 32>}, {transform_indices = @transform_2, window_bounds = array<i64: 1, 8, 32>}, {transform_indices = @transform_3, window_bounds = array<i64: 1, 8, 32>}, {transform_indices = @transform_4, window_bounds = array<i64: 1, 1, 24>}, {pipeline_mode = #tpu.pipeline_mode<synchronous>, transform_indices = @transform_5, window_bounds = array<i64: 9, 32>}, {pipeline_mode = #tpu.pipeline_mode<synchronous>, transform_indices = @transform_6, window_bounds = array<i64: 1, 64>}, {pipeline_mode = #tpu.pipeline_mode<synchronous>, transform_indices = @transform_7, window_bounds = array<i64: 32, 32>}, {pipeline_mode = #tpu.pipeline_mode<synchronous>, transform_indices = @transform_8, window_bounds = array<i64: 32, 64>}, {pipeline_mode = #tpu.pipeline_mode<synchronous>, transform_indices = @transform_9, window_bounds = array<i64: 32, 32>}, {pipeline_mode = #tpu.pipeline_mode<synchronous>, transform_indices = @transform_10, window_bounds = array<i64: 32, 64>}, {pipeline_mode = #tpu.pipeline_mode<synchronous>, transform_indices = @transform_11, window_bounds = array<i64: 64, 32>}, {transform_indices = @transform_12, window_bounds = array<i64: 1, 8, 32>}, {transform_indices = @transform_13, window_bounds = array<i64: 1, 4, 8, 24>}]} {
    %c0 = arith.constant 0 : index
    %c0_0 = arith.constant 0 : index
    %0 = vector.load %arg6[%c0, %c0_0] : memref<9x32xf32, #tpu.memory_space<vmem>>, vector<9x32xf32>
    %1 = vector.extract_strided_slice %0 {offsets = [0, 0], sizes = [1, 32], strides = [1, 1]} : vector<9x32xf32> to vector<1x32xf32>
    %2 = vector.extract_strided_slice %0 {offsets = [1, 0], sizes = [1, 32], strides = [1, 1]} : vector<9x32xf32> to vector<1x32xf32>
    %3 = vector.extract_strided_slice %0 {offsets = [2, 0], sizes = [1, 32], strides = [1, 1]} : vector<9x32xf32> to vector<1x32xf32>
    %4 = vector.extract_strided_slice %0 {offsets = [3, 0], sizes = [1, 32], strides = [1, 1]} : vector<9x32xf32> to vector<1x32xf32>
    %5 = vector.extract_strided_slice %0 {offsets = [4, 0], sizes = [1, 32], strides = [1, 1]} : vector<9x32xf32> to vector<1x32xf32>
    %6 = vector.extract_strided_slice %0 {offsets = [5, 0], sizes = [1, 32], strides = [1, 1]} : vector<9x32xf32> to vector<1x32xf32>
    %7 = vector.extract_strided_slice %0 {offsets = [6, 0], sizes = [1, 32], strides = [1, 1]} : vector<9x32xf32> to vector<1x32xf32>
    %8 = vector.extract_strided_slice %0 {offsets = [7, 0], sizes = [1, 32], strides = [1, 1]} : vector<9x32xf32> to vector<1x32xf32>
    %9 = vector.extract_strided_slice %0 {offsets = [8, 0], sizes = [1, 32], strides = [1, 1]} : vector<9x32xf32> to vector<1x32xf32>
    %c0_1 = arith.constant 0 : index
    %c0_2 = arith.constant 0 : index
    %c0_3 = arith.constant 0 : index
    %10 = vector.load %arg1[%c0_1, %c0_2, %c0_3] : memref<1x8x32xf32, #tpu.memory_space<vmem>>, vector<1x8x32xf32>
    %11 = vector.shape_cast %10 : vector<1x8x32xf32> to vector<8x32xf32>
    %cst = arith.constant dense<0.000000e+00> : vector<8xf32>
    %12 = vector.multi_reduction <add>, %11, %cst [1] : vector<8x32xf32> to vector<8xf32>
    %13 = vector.shape_cast %12 : vector<8xf32> to vector<8x1xf32>
    %cst_4 = arith.constant 3.200000e+01 : f32
    %14 = vector.broadcast %cst_4 : f32 to vector<8x1xf32>
    %15 = arith.divf %13, %14 : vector<8x1xf32>
    %16 = vector.broadcast %15 : vector<8x1xf32> to vector<8x32xf32>
    %17 = arith.subf %11, %16 : vector<8x32xf32>
    %18 = arith.mulf %17, %17 : vector<8x32xf32>
    %cst_5 = arith.constant dense<0.000000e+00> : vector<8xf32>
    %19 = vector.multi_reduction <add>, %18, %cst_5 [1] : vector<8x32xf32> to vector<8xf32>
    %20 = vector.shape_cast %19 : vector<8xf32> to vector<8x1xf32>
    %cst_6 = arith.constant 3.100000e+01 : f32
    %21 = vector.broadcast %cst_6 : f32 to vector<8x1xf32>
    %22 = arith.divf %20, %21 : vector<8x1xf32>
    %23 = math.sqrt %22 : vector<8x1xf32>
    %24 = vector.broadcast %1 : vector<1x32xf32> to vector<8x32xf32>
    %25 = arith.mulf %24, %17 : vector<8x32xf32>
    %cst_7 = arith.constant 9.99999997E-7 : f32
    %26 = vector.broadcast %cst_7 : f32 to vector<8x1xf32>
    %27 = arith.addf %23, %26 : vector<8x1xf32>
    %cst_8 = arith.constant 1.000000e+00 : f32
    %28 = vector.broadcast %cst_8 : f32 to vector<8x1xf32>
    %29 = arith.divf %28, %27 : vector<8x1xf32>
    %30 = vector.broadcast %29 : vector<8x1xf32> to vector<8x32xf32>
    %31 = arith.mulf %25, %30 : vector<8x32xf32>
    %32 = vector.broadcast %2 : vector<1x32xf32> to vector<8x32xf32>
    %33 = arith.addf %31, %32 : vector<8x32xf32>
    %34 = arith.truncf %33 : vector<8x32xf32> to vector<8x32xbf16>
    %c0_9 = arith.constant 0 : index
    %c0_10 = arith.constant 0 : index
    %35 = vector.load %arg8[%c0_9, %c0_10] : memref<32x32xbf16, #tpu.memory_space<vmem>>, vector<32x32xbf16>
    %cst_11 = arith.constant dense<0.000000e+00> : vector<8x32xf32>
    %36 = tpu.matmul %34, %35, %cst_11 {dimension_numbers = #tpu.dot_dimension_numbers<[1], [0], [0], [1], [0, 0, 1, 1], [], []>} : vector<8x32xbf16>, vector<32x32xbf16>, vector<8x32xf32> -> vector<8x32xf32>
    %37 = vector.broadcast %3 : vector<1x32xf32> to vector<8x32xf32>
    %38 = arith.addf %36, %37 : vector<8x32xf32>
    %c0_12 = arith.constant 0 : index
    %c0_13 = arith.constant 0 : index
    %c0_14 = arith.constant 0 : index
    %39 = vector.load %arg2[%c0_12, %c0_13, %c0_14] : memref<1x8x32xf32, #tpu.memory_space<vmem>>, vector<1x8x32xf32>
    %c0_15 = arith.constant 0 : index
    %c0_16 = arith.constant 0 : index
    %c0_17 = arith.constant 0 : index
    %40 = vector.load %arg3[%c0_15, %c0_16, %c0_17] : memref<1x8x32xf32, #tpu.memory_space<vmem>>, vector<1x8x32xf32>
    %c0_18 = arith.constant 0 : index
    %c0_19 = arith.constant 0 : index
    %c0_20 = arith.constant 0 : index
    %41 = vector.load %arg4[%c0_18, %c0_19, %c0_20] : memref<1x8x32xf32, #tpu.memory_space<vmem>>, vector<1x8x32xf32>
    %42 = tpu.concatenate %39, %40, %41 in 1 : vector<1x8x32xf32>, vector<1x8x32xf32>, vector<1x8x32xf32> -> vector<1x24x32xf32>
    %43 = vector.shape_cast %42 : vector<1x24x32xf32> to vector<24x32xf32>
    %44 = arith.truncf %43 : vector<24x32xf32> to vector<24x32xbf16>
    %c0_21 = arith.constant 0 : index
    %c0_22 = arith.constant 0 : index
    %45 = vector.load %arg9[%c0_21, %c0_22] : memref<32x64xbf16, #tpu.memory_space<vmem>>, vector<32x64xbf16>
    %cst_23 = arith.constant dense<0.000000e+00> : vector<24x64xf32>
    %46 = tpu.matmul %44, %45, %cst_23 {dimension_numbers = #tpu.dot_dimension_numbers<[1], [0], [0], [1], [0, 0, 1, 1], [], []>} : vector<24x32xbf16>, vector<32x64xbf16>, vector<24x64xf32> -> vector<24x64xf32>
    %47 = vector.extract_strided_slice %46 {offsets = [0, 0], sizes = [24, 32], strides = [1, 1]} : vector<24x64xf32> to vector<24x32xf32>
    %48 = vector.broadcast %4 : vector<1x32xf32> to vector<24x32xf32>
    %49 = arith.addf %47, %48 : vector<24x32xf32>
    %50 = vector.extract_strided_slice %46 {offsets = [0, 32], sizes = [24, 32], strides = [1, 1]} : vector<24x64xf32> to vector<24x32xf32>
    %51 = vector.broadcast %5 : vector<1x32xf32> to vector<24x32xf32>
    %52 = arith.addf %50, %51 : vector<24x32xf32>
    %53 = arith.truncf %38 : vector<8x32xf32> to vector<8x32xbf16>
    %54 = arith.truncf %49 : vector<24x32xf32> to vector<24x32xbf16>
    %55 = arith.truncf %52 : vector<24x32xf32> to vector<24x32xbf16>
    %c0_24 = arith.constant 0 : index
    %c0_25 = arith.constant 0 : index
    %c0_26 = arith.constant 0 : index
    %56 = vector.load %arg5[%c0_24, %c0_25, %c0_26] : memref<1x1x24xf32, #tpu.memory_space<vmem>>, vector<1x1x24xf32>
    %cst_27 = arith.constant 1.000000e+00 : f32
    %57 = vector.broadcast %cst_27 : f32 to vector<1x1x24xf32>
    %58 = arith.subf %57, %56 : vector<1x1x24xf32>
    %cst_28 = arith.constant -1.000000e+09 : f32
    %59 = vector.broadcast %cst_28 : f32 to vector<1x1x24xf32>
    %60 = arith.mulf %58, %59 : vector<1x1x24xf32>
    %61 = vector.extract_strided_slice %53 {offsets = [0, 0], sizes = [8, 8], strides = [1, 1]} : vector<8x32xbf16> to vector<8x8xbf16>
    %62 = vector.shape_cast %61 : vector<8x8xbf16> to vector<1x8x8xbf16>
    %63 = vector.extract_strided_slice %54 {offsets = [0, 0], sizes = [24, 8], strides = [1, 1]} : vector<24x32xbf16> to vector<24x8xbf16>
    %64 = vector.shape_cast %63 : vector<24x8xbf16> to vector<1x24x8xbf16>
    %65 = vector.extract_strided_slice %55 {offsets = [0, 0], sizes = [24, 8], strides = [1, 1]} : vector<24x32xbf16> to vector<24x8xbf16>
    %66 = vector.shape_cast %65 : vector<24x8xbf16> to vector<1x24x8xbf16>
    "tpu.trace_start"() <{level = 10 : i32, message = "bqd,bkd->bqk"}> : () -> ()
    %cst_29 = arith.constant dense<0.000000e+00> : vector<1x8x24xf32>
    %67 = tpu.matmul %62, %64, %cst_29 {dimension_numbers = #tpu.dot_dimension_numbers<[2], [2], [1], [1], [0, 0, 0, 1, 1, 1], [0], [0]>} : vector<1x8x8xbf16>, vector<1x24x8xbf16>, vector<1x8x24xf32> -> vector<1x8x24xf32>
    "tpu.trace_stop"() : () -> ()
    %68 = vector.broadcast %60 : vector<1x1x24xf32> to vector<1x8x24xf32>
    %69 = arith.addf %67, %68 : vector<1x8x24xf32>
    %cst_30 = arith.constant dense<0xFF800000> : vector<1x8xf32>
    %70 = vector.multi_reduction <maximumf>, %69, %cst_30 [2] : vector<1x8x24xf32> to vector<1x8xf32>
    %71 = vector.shape_cast %70 : vector<1x8xf32> to vector<1x8x1xf32>
    %72 = vector.broadcast %71 : vector<1x8x1xf32> to vector<1x8x24xf32>
    %73 = arith.subf %69, %72 : vector<1x8x24xf32>
    %74 = math.exp %73 : vector<1x8x24xf32>
    %cst_31 = arith.constant dense<0.000000e+00> : vector<1x8xf32>
    %75 = vector.multi_reduction <add>, %74, %cst_31 [2] : vector<1x8x24xf32> to vector<1x8xf32>
    %76 = vector.shape_cast %75 : vector<1x8xf32> to vector<1x8x1xf32>
    %77 = tpu.reciprocal %76 {approx = true} : vector<1x8x1xf32> -> vector<1x8x1xf32>
    %78 = vector.broadcast %77 : vector<1x8x1xf32> to vector<1x8x24xf32>
    %79 = arith.mulf %74, %78 : vector<1x8x24xf32>
    %80 = vector.shape_cast %79 : vector<1x8x24xf32> to vector<1x1x8x24xf32>
    %81 = arith.truncf %80 : vector<1x1x8x24xf32> to vector<1x1x8x24xbf16>
    %c0_32 = arith.constant 0 : index
    %c0_33 = arith.constant 0 : index
    %c0_34 = arith.constant 0 : index
    %c0_35 = arith.constant 0 : index
    %82 = vector.load %arg14[%c0_32, %c0_33, %c0_34, %c0_35] : memref<1x4x8x24xbf16, #tpu.memory_space<vmem>>, vector<1x1x8x24xbf16>
    tpu.vector_store %arg14[%c0_32, %c0_33, %c0_34, %c0_35], %81 {strides = array<i32>} : memref<1x4x8x24xbf16, #tpu.memory_space<vmem>>, vector<1x1x8x24xbf16>,
    %83 = arith.truncf %79 : vector<1x8x24xf32> to vector<1x8x24xbf16>
    "tpu.trace_start"() <{level = 10 : i32, message = "bqk,bkd->bqd"}> : () -> ()
    %cst_36 = arith.constant dense<0.000000e+00> : vector<1x8x8xf32>
    %84 = tpu.matmul %83, %66, %cst_36 {dimension_numbers = #tpu.dot_dimension_numbers<[2], [1], [1], [2], [0, 0, 0, 1, 1, 2], [0], [0]>} : vector<1x8x24xbf16>, vector<1x24x8xbf16>, vector<1x8x8xf32> -> vector<1x8x8xf32>
    "tpu.trace_stop"() : () -> ()
    %85 = vector.shape_cast %84 : vector<1x8x8xf32> to vector<8x8xf32>
    %c0_37 = arith.constant 0 : index
    %c0_38 = arith.constant 0 : index
    %86 = vector.load %arg15[%c0_37, %c0_38] : memref<8x32xf32, #tpu.memory_space<vmem>>, vector<8x8xf32>
    tpu.vector_store %arg15[%c0_37, %c0_38], %85 {strides = array<i32>} : memref<8x32xf32, #tpu.memory_space<vmem>>, vector<8x8xf32>,
    %87 = vector.extract_strided_slice %53 {offsets = [0, 8], sizes = [8, 8], strides = [1, 1]} : vector<8x32xbf16> to vector<8x8xbf16>
    %88 = vector.shape_cast %87 : vector<8x8xbf16> to vector<1x8x8xbf16>
    %89 = vector.extract_strided_slice %54 {offsets = [0, 8], sizes = [24, 8], strides = [1, 1]} : vector<24x32xbf16> to vector<24x8xbf16>
    %90 = vector.shape_cast %89 : vector<24x8xbf16> to vector<1x24x8xbf16>
    %91 = vector.extract_strided_slice %55 {offsets = [0, 8], sizes = [24, 8], strides = [1, 1]} : vector<24x32xbf16> to vector<24x8xbf16>
    %92 = vector.shape_cast %91 : vector<24x8xbf16> to vector<1x24x8xbf16>
    "tpu.trace_start"() <{level = 10 : i32, message = "bqd,bkd->bqk"}> : () -> ()
    %cst_39 = arith.constant dense<0.000000e+00> : vector<1x8x24xf32>
    %93 = tpu.matmul %88, %90, %cst_39 {dimension_numbers = #tpu.dot_dimension_numbers<[2], [2], [1], [1], [0, 0, 0, 1, 1, 1], [0], [0]>} : vector<1x8x8xbf16>, vector<1x24x8xbf16>, vector<1x8x24xf32> -> vector<1x8x24xf32>
    "tpu.trace_stop"() : () -> ()
    %94 = vector.broadcast %60 : vector<1x1x24xf32> to vector<1x8x24xf32>
    %95 = arith.addf %93, %94 : vector<1x8x24xf32>
    %cst_40 = arith.constant dense<0xFF800000> : vector<1x8xf32>
    %96 = vector.multi_reduction <maximumf>, %95, %cst_40 [2] : vector<1x8x24xf32> to vector<1x8xf32>
    %97 = vector.shape_cast %96 : vector<1x8xf32> to vector<1x8x1xf32>
    %98 = vector.broadcast %97 : vector<1x8x1xf32> to vector<1x8x24xf32>
    %99 = arith.subf %95, %98 : vector<1x8x24xf32>
    %100 = math.exp %99 : vector<1x8x24xf32>
    %cst_41 = arith.constant dense<0.000000e+00> : vector<1x8xf32>
    %101 = vector.multi_reduction <add>, %100, %cst_41 [2] : vector<1x8x24xf32> to vector<1x8xf32>
    %102 = vector.shape_cast %101 : vector<1x8xf32> to vector<1x8x1xf32>
    %103 = tpu.reciprocal %102 {approx = true} : vector<1x8x1xf32> -> vector<1x8x1xf32>
    %104 = vector.broadcast %103 : vector<1x8x1xf32> to vector<1x8x24xf32>
    %105 = arith.mulf %100, %104 : vector<1x8x24xf32>
    %106 = vector.shape_cast %105 : vector<1x8x24xf32> to vector<1x1x8x24xf32>
    %107 = arith.truncf %106 : vector<1x1x8x24xf32> to vector<1x1x8x24xbf16>
    %c0_42 = arith.constant 0 : index
    %c1 = arith.constant 1 : index
    %c0_43 = arith.constant 0 : index
    %c0_44 = arith.constant 0 : index
    %108 = vector.load %arg14[%c0_42, %c1, %c0_43, %c0_44] : memref<1x4x8x24xbf16, #tpu.memory_space<vmem>>, vector<1x1x8x24xbf16>
    tpu.vector_store %arg14[%c0_42, %c1, %c0_43, %c0_44], %107 {strides = array<i32>} : memref<1x4x8x24xbf16, #tpu.memory_space<vmem>>, vector<1x1x8x24xbf16>,
    %109 = arith.truncf %105 : vector<1x8x24xf32> to vector<1x8x24xbf16>
    "tpu.trace_start"() <{level = 10 : i32, message = "bqk,bkd->bqd"}> : () -> ()
    %cst_45 = arith.constant dense<0.000000e+00> : vector<1x8x8xf32>
    %110 = tpu.matmul %109, %92, %cst_45 {dimension_numbers = #tpu.dot_dimension_numbers<[2], [1], [1], [2], [0, 0, 0, 1, 1, 2], [0], [0]>} : vector<1x8x24xbf16>, vector<1x24x8xbf16>, vector<1x8x8xf32> -> vector<1x8x8xf32>
    "tpu.trace_stop"() : () -> ()
    %111 = vector.shape_cast %110 : vector<1x8x8xf32> to vector<8x8xf32>
    %c0_46 = arith.constant 0 : index
    %c8 = arith.constant 8 : index
    %112 = vector.load %arg15[%c0_46, %c8] : memref<8x32xf32, #tpu.memory_space<vmem>>, vector<8x8xf32>
    tpu.vector_store %arg15[%c0_46, %c8], %111 {strides = array<i32>} : memref<8x32xf32, #tpu.memory_space<vmem>>, vector<8x8xf32>,
    %113 = vector.extract_strided_slice %53 {offsets = [0, 16], sizes = [8, 8], strides = [1, 1]} : vector<8x32xbf16> to vector<8x8xbf16>
    %114 = vector.shape_cast %113 : vector<8x8xbf16> to vector<1x8x8xbf16>
    %115 = vector.extract_strided_slice %54 {offsets = [0, 16], sizes = [24, 8], strides = [1, 1]} : vector<24x32xbf16> to vector<24x8xbf16>
    %116 = vector.shape_cast %115 : vector<24x8xbf16> to vector<1x24x8xbf16>
    %117 = vector.extract_strided_slice %55 {offsets = [0, 16], sizes = [24, 8], strides = [1, 1]} : vector<24x32xbf16> to vector<24x8xbf16>
    %118 = vector.shape_cast %117 : vector<24x8xbf16> to vector<1x24x8xbf16>
    "tpu.trace_start"() <{level = 10 : i32, message = "bqd,bkd->bqk"}> : () -> ()
    %cst_47 = arith.constant dense<0.000000e+00> : vector<1x8x24xf32>
    %119 = tpu.matmul %114, %116, %cst_47 {dimension_numbers = #tpu.dot_dimension_numbers<[2], [2], [1], [1], [0, 0, 0, 1, 1, 1], [0], [0]>} : vector<1x8x8xbf16>, vector<1x24x8xbf16>, vector<1x8x24xf32> -> vector<1x8x24xf32>
    "tpu.trace_stop"() : () -> ()
    %120 = vector.broadcast %60 : vector<1x1x24xf32> to vector<1x8x24xf32>
    %121 = arith.addf %119, %120 : vector<1x8x24xf32>
    %cst_48 = arith.constant dense<0xFF800000> : vector<1x8xf32>
    %122 = vector.multi_reduction <maximumf>, %121, %cst_48 [2] : vector<1x8x24xf32> to vector<1x8xf32>
    %123 = vector.shape_cast %122 : vector<1x8xf32> to vector<1x8x1xf32>
    %124 = vector.broadcast %123 : vector<1x8x1xf32> to vector<1x8x24xf32>
    %125 = arith.subf %121, %124 : vector<1x8x24xf32>
    %126 = math.exp %125 : vector<1x8x24xf32>
    %cst_49 = arith.constant dense<0.000000e+00> : vector<1x8xf32>
    %127 = vector.multi_reduction <add>, %126, %cst_49 [2] : vector<1x8x24xf32> to vector<1x8xf32>
    %128 = vector.shape_cast %127 : vector<1x8xf32> to vector<1x8x1xf32>
    %129 = tpu.reciprocal %128 {approx = true} : vector<1x8x1xf32> -> vector<1x8x1xf32>
    %130 = vector.broadcast %129 : vector<1x8x1xf32> to vector<1x8x24xf32>
    %131 = arith.mulf %126, %130 : vector<1x8x24xf32>
    %132 = vector.shape_cast %131 : vector<1x8x24xf32> to vector<1x1x8x24xf32>
    %133 = arith.truncf %132 : vector<1x1x8x24xf32> to vector<1x1x8x24xbf16>
    %c0_50 = arith.constant 0 : index
    %c2 = arith.constant 2 : index
    %c0_51 = arith.constant 0 : index
    %c0_52 = arith.constant 0 : index
    %134 = vector.load %arg14[%c0_50, %c2, %c0_51, %c0_52] : memref<1x4x8x24xbf16, #tpu.memory_space<vmem>>, vector<1x1x8x24xbf16>
    tpu.vector_store %arg14[%c0_50, %c2, %c0_51, %c0_52], %133 {strides = array<i32>} : memref<1x4x8x24xbf16, #tpu.memory_space<vmem>>, vector<1x1x8x24xbf16>,
    %135 = arith.truncf %131 : vector<1x8x24xf32> to vector<1x8x24xbf16>
    "tpu.trace_start"() <{level = 10 : i32, message = "bqk,bkd->bqd"}> : () -> ()
    %cst_53 = arith.constant dense<0.000000e+00> : vector<1x8x8xf32>
    %136 = tpu.matmul %135, %118, %cst_53 {dimension_numbers = #tpu.dot_dimension_numbers<[2], [1], [1], [2], [0, 0, 0, 1, 1, 2], [0], [0]>} : vector<1x8x24xbf16>, vector<1x24x8xbf16>, vector<1x8x8xf32> -> vector<1x8x8xf32>
    "tpu.trace_stop"() : () -> ()
    %137 = vector.shape_cast %136 : vector<1x8x8xf32> to vector<8x8xf32>
    %c0_54 = arith.constant 0 : index
    %c16 = arith.constant 16 : index
    %138 = vector.load %arg15[%c0_54, %c16] : memref<8x32xf32, #tpu.memory_space<vmem>>, vector<8x8xf32>
    tpu.vector_store %arg15[%c0_54, %c16], %137 {strides = array<i32>} : memref<8x32xf32, #tpu.memory_space<vmem>>, vector<8x8xf32>,
    %139 = vector.extract_strided_slice %53 {offsets = [0, 24], sizes = [8, 8], strides = [1, 1]} : vector<8x32xbf16> to vector<8x8xbf16>
    %140 = vector.shape_cast %139 : vector<8x8xbf16> to vector<1x8x8xbf16>
    %141 = vector.extract_strided_slice %54 {offsets = [0, 24], sizes = [24, 8], strides = [1, 1]} : vector<24x32xbf16> to vector<24x8xbf16>
    %142 = vector.shape_cast %141 : vector<24x8xbf16> to vector<1x24x8xbf16>
    %143 = vector.extract_strided_slice %55 {offsets = [0, 24], sizes = [24, 8], strides = [1, 1]} : vector<24x32xbf16> to vector<24x8xbf16>
    %144 = vector.shape_cast %143 : vector<24x8xbf16> to vector<1x24x8xbf16>
    "tpu.trace_start"() <{level = 10 : i32, message = "bqd,bkd->bqk"}> : () -> ()
    %cst_55 = arith.constant dense<0.000000e+00> : vector<1x8x24xf32>
    %145 = tpu.matmul %140, %142, %cst_55 {dimension_numbers = #tpu.dot_dimension_numbers<[2], [2], [1], [1], [0, 0, 0, 1, 1, 1], [0], [0]>} : vector<1x8x8xbf16>, vector<1x24x8xbf16>, vector<1x8x24xf32> -> vector<1x8x24xf32>
    "tpu.trace_stop"() : () -> ()
    %146 = vector.broadcast %60 : vector<1x1x24xf32> to vector<1x8x24xf32>
    %147 = arith.addf %145, %146 : vector<1x8x24xf32>
    %cst_56 = arith.constant dense<0xFF800000> : vector<1x8xf32>
    %148 = vector.multi_reduction <maximumf>, %147, %cst_56 [2] : vector<1x8x24xf32> to vector<1x8xf32>
    %149 = vector.shape_cast %148 : vector<1x8xf32> to vector<1x8x1xf32>
    %150 = vector.broadcast %149 : vector<1x8x1xf32> to vector<1x8x24xf32>
    %151 = arith.subf %147, %150 : vector<1x8x24xf32>
    %152 = math.exp %151 : vector<1x8x24xf32>
    %cst_57 = arith.constant dense<0.000000e+00> : vector<1x8xf32>
    %153 = vector.multi_reduction <add>, %152, %cst_57 [2] : vector<1x8x24xf32> to vector<1x8xf32>
    %154 = vector.shape_cast %153 : vector<1x8xf32> to vector<1x8x1xf32>
    %155 = tpu.reciprocal %154 {approx = true} : vector<1x8x1xf32> -> vector<1x8x1xf32>
    %156 = vector.broadcast %155 : vector<1x8x1xf32> to vector<1x8x24xf32>
    %157 = arith.mulf %152, %156 : vector<1x8x24xf32>
    %158 = vector.shape_cast %157 : vector<1x8x24xf32> to vector<1x1x8x24xf32>
    %159 = arith.truncf %158 : vector<1x1x8x24xf32> to vector<1x1x8x24xbf16>
    %c0_58 = arith.constant 0 : index
    %c3 = arith.constant 3 : index
    %c0_59 = arith.constant 0 : index
    %c0_60 = arith.constant 0 : index
    %160 = vector.load %arg14[%c0_58, %c3, %c0_59, %c0_60] : memref<1x4x8x24xbf16, #tpu.memory_space<vmem>>, vector<1x1x8x24xbf16>
    tpu.vector_store %arg14[%c0_58, %c3, %c0_59, %c0_60], %159 {strides = array<i32>} : memref<1x4x8x24xbf16, #tpu.memory_space<vmem>>, vector<1x1x8x24xbf16>,
    %161 = arith.truncf %157 : vector<1x8x24xf32> to vector<1x8x24xbf16>
    "tpu.trace_start"() <{level = 10 : i32, message = "bqk,bkd->bqd"}> : () -> ()
    %cst_61 = arith.constant dense<0.000000e+00> : vector<1x8x8xf32>
    %162 = tpu.matmul %161, %144, %cst_61 {dimension_numbers = #tpu.dot_dimension_numbers<[2], [1], [1], [2], [0, 0, 0, 1, 1, 2], [0], [0]>} : vector<1x8x24xbf16>, vector<1x24x8xbf16>, vector<1x8x8xf32> -> vector<1x8x8xf32>
    "tpu.trace_stop"() : () -> ()
    %163 = vector.shape_cast %162 : vector<1x8x8xf32> to vector<8x8xf32>
    %c0_62 = arith.constant 0 : index
    %c24 = arith.constant 24 : index
    %164 = vector.load %arg15[%c0_62, %c24] : memref<8x32xf32, #tpu.memory_space<vmem>>, vector<8x8xf32>
    tpu.vector_store %arg15[%c0_62, %c24], %163 {strides = array<i32>} : memref<8x32xf32, #tpu.memory_space<vmem>>, vector<8x8xf32>,
    %c0_63 = arith.constant 0 : index
    %c0_64 = arith.constant 0 : index
    %165 = vector.load %arg15[%c0_63, %c0_64] : memref<8x32xf32, #tpu.memory_space<vmem>>, vector<8x32xf32>
    %166 = arith.truncf %165 : vector<8x32xf32> to vector<8x32xbf16>
    %c0_65 = arith.constant 0 : index
    %c0_66 = arith.constant 0 : index
    %167 = vector.load %arg10[%c0_65, %c0_66] : memref<32x32xbf16, #tpu.memory_space<vmem>>, vector<32x32xbf16>
    %cst_67 = arith.constant dense<0.000000e+00> : vector<8x32xf32>
    %168 = tpu.matmul %166, %167, %cst_67 {dimension_numbers = #tpu.dot_dimension_numbers<[1], [0], [0], [1], [0, 0, 1, 1], [], []>} : vector<8x32xbf16>, vector<32x32xbf16>, vector<8x32xf32> -> vector<8x32xf32>
    %169 = vector.broadcast %6 : vector<1x32xf32> to vector<8x32xf32>
    %170 = arith.addf %168, %169 : vector<8x32xf32>
    %171 = arith.addf %170, %11 : vector<8x32xf32>
    %cst_68 = arith.constant dense<0.000000e+00> : vector<8xf32>
    %172 = vector.multi_reduction <add>, %171, %cst_68 [1] : vector<8x32xf32> to vector<8xf32>
    %173 = vector.shape_cast %172 : vector<8xf32> to vector<8x1xf32>
    %cst_69 = arith.constant 3.200000e+01 : f32
    %174 = vector.broadcast %cst_69 : f32 to vector<8x1xf32>
    %175 = arith.divf %173, %174 : vector<8x1xf32>
    %176 = vector.broadcast %175 : vector<8x1xf32> to vector<8x32xf32>
    %177 = arith.subf %171, %176 : vector<8x32xf32>
    %178 = arith.mulf %177, %177 : vector<8x32xf32>
    %cst_70 = arith.constant dense<0.000000e+00> : vector<8xf32>
    %179 = vector.multi_reduction <add>, %178, %cst_70 [1] : vector<8x32xf32> to vector<8xf32>
    %180 = vector.shape_cast %179 : vector<8xf32> to vector<8x1xf32>
    %cst_71 = arith.constant 3.200000e+01 : f32
    %181 = vector.broadcast %cst_71 : f32 to vector<8x1xf32>
    %182 = arith.divf %180, %181 : vector<8x1xf32>
    %183 = vector.broadcast %7 : vector<1x32xf32> to vector<8x32xf32>
    %184 = arith.mulf %183, %177 : vector<8x32xf32>
    %cst_72 = arith.constant 9.99999997E-7 : f32
    %185 = vector.broadcast %cst_72 : f32 to vector<8x1xf32>
    %186 = arith.addf %182, %185 : vector<8x1xf32>
    %187 = math.rsqrt %186 : vector<8x1xf32>
    %188 = vector.broadcast %187 : vector<8x1xf32> to vector<8x32xf32>
    %189 = arith.mulf %184, %188 : vector<8x32xf32>
    %190 = vector.broadcast %8 : vector<1x32xf32> to vector<8x32xf32>
    %191 = arith.addf %189, %190 : vector<8x32xf32>
    %192 = arith.truncf %191 : vector<8x32xf32> to vector<8x32xbf16>
    %c0_73 = arith.constant 0 : index
    %c0_74 = arith.constant 0 : index
    %193 = vector.load %arg11[%c0_73, %c0_74] : memref<32x64xbf16, #tpu.memory_space<vmem>>, vector<32x64xbf16>
    %cst_75 = arith.constant dense<0.000000e+00> : vector<8x64xf32>
    %194 = tpu.matmul %192, %193, %cst_75 {dimension_numbers = #tpu.dot_dimension_numbers<[1], [0], [0], [1], [0, 0, 1, 1], [], []>} : vector<8x32xbf16>, vector<32x64xbf16>, vector<8x64xf32> -> vector<8x64xf32>
    %c0_76 = arith.constant 0 : index
    %c0_77 = arith.constant 0 : index
    %195 = vector.load %arg7[%c0_76, %c0_77] : memref<1x64xf32, #tpu.memory_space<vmem>>, vector<1x64xf32>
    %196 = vector.broadcast %195 : vector<1x64xf32> to vector<8x64xf32>
    %197 = arith.addf %194, %196 : vector<8x64xf32>
    %cst_78 = arith.constant 5.000000e-01 : f32
    %198 = vector.broadcast %cst_78 : f32 to vector<8x64xf32>
    %199 = arith.mulf %198, %197 : vector<8x64xf32>
    %cst_79 = arith.constant 4.471500e-02 : f32
    %200 = vector.broadcast %cst_79 : f32 to vector<8x64xf32>
    %201 = arith.mulf %200, %197 : vector<8x64xf32>
    %202 = arith.mulf %201, %197 : vector<8x64xf32>
    %203 = arith.mulf %202, %197 : vector<8x64xf32>
    %204 = arith.addf %197, %203 : vector<8x64xf32>
    %cst_80 = arith.constant 0.797884583 : f32
    %205 = vector.broadcast %cst_80 : f32 to vector<8x64xf32>
    %206 = arith.mulf %205, %204 : vector<8x64xf32>
    %207 = math.tanh %206 : vector<8x64xf32>
    %cst_81 = arith.constant 1.000000e+00 : f32
    %208 = vector.broadcast %cst_81 : f32 to vector<8x64xf32>
    %209 = arith.addf %208, %207 : vector<8x64xf32>
    %210 = arith.mulf %199, %209 : vector<8x64xf32>
    %211 = arith.truncf %210 : vector<8x64xf32> to vector<8x64xbf16>
    %c0_82 = arith.constant 0 : index
    %c0_83 = arith.constant 0 : index
    %212 = vector.load %arg12[%c0_82, %c0_83] : memref<64x32xbf16, #tpu.memory_space<vmem>>, vector<64x32xbf16>
    %cst_84 = arith.constant dense<0.000000e+00> : vector<8x32xf32>
    %213 = tpu.matmul %211, %212, %cst_84 {dimension_numbers = #tpu.dot_dimension_numbers<[1], [0], [0], [1], [0, 0, 1, 1], [], []>} : vector<8x64xbf16>, vector<64x32xbf16>, vector<8x32xf32> -> vector<8x32xf32>
    %214 = vector.broadcast %9 : vector<1x32xf32> to vector<8x32xf32>
    %215 = arith.addf %213, %214 : vector<8x32xf32>
    %216 = arith.addf %215, %171 : vector<8x32xf32>
    %217 = vector.shape_cast %216 : vector<8x32xf32> to vector<1x8x32xf32>
    %c0_85 = arith.constant 0 : index
    %c0_86 = arith.constant 0 : index
    %c0_87 = arith.constant 0 : index
    %218 = vector.load %arg13[%c0_85, %c0_86, %c0_87] : memref<1x8x32xf32, #tpu.memory_space<vmem>>, vector<1x8x32xf32>
    tpu.vector_store %arg13[%c0_85, %c0_86, %c0_87], %217 {strides = array<i32>} : memref<1x8x32xf32, #tpu.memory_space<vmem>>, vector<1x8x32xf32>,
    return
  }
  func.func @transform_0(%arg0: i32) -> (i32, i32, i32) {
    %c0_i32 = arith.constant 0 : i32
    %c0_i32_0 = arith.constant 0 : i32
    %c0_i32_1 = arith.constant 0 : i32
    return %arg0, %c0_i32, %c0_i32_0 : i32, i32, i32
  }
  func.func @transform_1(%arg0: i32) -> (i32, i32, i32) {
    %c0_i32 = arith.constant 0 : i32
    %c0_i32_0 = arith.constant 0 : i32
    %c0_i32_1 = arith.constant 0 : i32
    return %arg0, %c0_i32, %c0_i32_0 : i32, i32, i32
  }
  func.func @transform_2(%arg0: i32) -> (i32, i32, i32) {
    %c0_i32 = arith.constant 0 : i32
    %c0_i32_0 = arith.constant 0 : i32
    %c0_i32_1 = arith.constant 0 : i32
    return %arg0, %c0_i32, %c0_i32_0 : i32, i32, i32
  }
  func.func @transform_3(%arg0: i32) -> (i32, i32, i32) {
    %c0_i32 = arith.constant 0 : i32
    %c0_i32_0 = arith.constant 0 : i32
    %c0_i32_1 = arith.constant 0 : i32
    return %arg0, %c0_i32, %c0_i32_0 : i32, i32, i32
  }
  func.func @transform_4(%arg0: i32) -> (i32, i32, i32) {
    %c0_i32 = arith.constant 0 : i32
    %c0_i32_0 = arith.constant 0 : i32
    %c0_i32_1 = arith.constant 0 : i32
    return %arg0, %c0_i32, %c0_i32_0 : i32, i32, i32
  }
  func.func @transform_5(%arg0: i32) -> (i32, i32) {
    %c0_i32 = arith.constant 0 : i32
    %c0_i32_0 = arith.constant 0 : i32
    %c0_i32_1 = arith.constant 0 : i32
    return %c0_i32, %c0_i32_0 : i32, i32
  }
  func.func @transform_6(%arg0: i32) -> (i32, i32) {
    %c0_i32 = arith.constant 0 : i32
    %c0_i32_0 = arith.constant 0 : i32
    %c0_i32_1 = arith.constant 0 : i32
    return %c0_i32, %c0_i32_0 : i32, i32
  }
  func.func @transform_7(%arg0: i32) -> (i32, i32) {
    %c0_i32 = arith.constant 0 : i32
    %c0_i32_0 = arith.constant 0 : i32
    %c0_i32_1 = arith.constant 0 : i32
    return %c0_i32, %c0_i32_0 : i32, i32
  }
  func.func @transform_8(%arg0: i32) -> (i32, i32) {
    %c0_i32 = arith.constant 0 : i32
    %c0_i32_0 = arith.constant 0 : i32
    %c0_i32_1 = arith.constant 0 : i32
    return %c0_i32, %c0_i32_0 : i32, i32
  }
  func.func @transform_9(%arg0: i32) -> (i32, i32) {
    %c0_i32 = arith.constant 0 : i32
    %c0_i32_0 = arith.constant 0 : i32
    %c0_i32_1 = arith.constant 0 : i32
    return %c0_i32, %c0_i32_0 : i32, i32
  }
  func.func @transform_10(%arg0: i32) -> (i32, i32) {
    %c0_i32 = arith.constant 0 : i32
    %c0_i32_0 = arith.constant 0 : i32
    %c0_i32_1 = arith.constant 0 : i32
    return %c0_i32, %c0_i32_0 : i32, i32
  }
  func.func @transform_11(%arg0: i32) -> (i32, i32) {
    %c0_i32 = arith.constant 0 : i32
    %c0_i32_0 = arith.constant 0 : i32
    %c0_i32_1 = arith.constant 0 : i32
    return %c0_i32, %c0_i32_0 : i32, i32
  }
  func.func @transform_12(%arg0: i32) -> (i32, i32, i32) {
    %c0_i32 = arith.constant 0 : i32
    %c0_i32_0 = arith.constant 0 : i32
    %c0_i32_1 = arith.constant 0 : i32
    return %arg0, %c0_i32, %c0_i32_0 : i32, i32, i32
  }
  func.func @transform_13(%arg0: i32) -> (i32, i32, i32, i32) {
    %c0_i32 = arith.constant 0 : i32
    %c0_i32_0 = arith.constant 0 : i32
    %c0_i32_1 = arith.constant 0 : i32
    %c0_i32_2 = arith.constant 0 : i32
    return %arg0, %c0_i32, %c0_i32_0, %c0_i32_1 : i32, i32, i32, i32
  }
}

</mosaic_0001>

<llo_original>
// kernel: tpu_custom_call.1
$region0: #{tpu_custom_call.1}
  #allocation0 [shape = 'u32[]', space=smem, size = 0x4, offset = 0x4, fixed_abs, tag = 'smem constant byte address 0x4 - core index']
  #allocation1 [shape = 'u32[144,128]{1,0:T(1,128)}', space=vmem, size = 0x12000, scoped, tag = 'internal scratch']
  #allocation2 [shape = 'f32[8,32]{1,0:T(8,128)}', space=vmem, size = 0x1000, scoped, tag = 'scratch operand']
  %s0 = inlined_call_operand.vmem [shape: f32[2,8,32], index: 0, kind: input, shape index: {}]
  %s1 = inlined_call_operand.vmem [shape: f32[2,8,32], index: 1, kind: input, shape index: {}]
  %s2 = inlined_call_operand.vmem [shape: f32[2,8,32], index: 2, kind: input, shape index: {}]
  %s3 = inlined_call_operand.hbm [shape: f32[2,8,32], index: 3, kind: input, shape index: {}]
  %s4 = inlined_call_operand.vmem [shape: f32[2,1,24], index: 4, kind: input, shape index: {}]
  %s5 = inlined_call_operand.hbm [shape: f32[9,32], index: 5, kind: input, shape index: {}]
  %s6 = inlined_call_operand.hbm [shape: f32[1,64], index: 6, kind: input, shape index: {}]
  %s7 = inlined_call_operand.hbm [shape: bf16[32,32], index: 7, kind: input, shape index: {}]
  %s8 = inlined_call_operand.hbm [shape: bf16[32,64], index: 8, kind: input, shape index: {}]
  %s9 = inlined_call_operand.vmem [shape: bf16[32,32], index: 9, kind: input, shape index: {}]
  %s10 = inlined_call_operand.hbm [shape: bf16[32,64], index: 10, kind: input, shape index: {}]
  %s11 = inlined_call_operand.vmem [shape: bf16[64,32], index: 11, kind: input, shape index: {}]
  %s12 = inlined_call_operand.hbm [shape: f32[2,8,32], index: 12, kind: output, shape index: {0}]
  %s13 = inlined_call_operand.hbm [shape: bf16[2,4,8,24], index: 13, kind: output, shape index: {1}]
  %14 = xla_tuple %s12, %s13
  %s15 = sld [smem:[#allocation0]]
  $region113: #{tpu_custom_call.1} parent=0
    _
  %s17 = ssub.s32 1, %s15
  %s18 = scalar_select 0, %s17, %s15
  $region1: #{tpu_custom_call.1} parent=0
    #allocation3 [shape = 'u8[8192]{0}', space=vmem, size = 0x2000, scoped, tag = 'input window, operand 3']
    #allocation4 [shape = 's32[2]{0}', space=sflag, size = 0x8, scoped, tag = 'scoped memory for tpu_custom_call.1']
    #allocation5 [shape = 's32[2]{0}', space=sflag, size = 0x8, scoped, tag = 'scoped memory for tpu_custom_call.1']
    #allocation6 [shape = 'u8[8192]{0}', space=vmem, size = 0x2000, scoped, tag = 'input window, operand 5, single buffered']
    #allocation7 [shape = 's32[1]{0}', space=sflag, size = 0x4, scoped, tag = 'scoped memory for tpu_custom_call.1']
    #allocation8 [shape = 'u8[512]{0}', space=vmem, size = 0x400, scoped, tag = 'input window, operand 6, single buffered']
    #allocation9 [shape = 'u8[8192]{0}', space=vmem, size = 0x2000, scoped, tag = 'input window, operand 7, single buffered']
    #allocation10 [shape = 's32[1]{0}', space=sflag, size = 0x4, scoped, tag = 'scoped memory for tpu_custom_call.1']
    #allocation11 [shape = 'u8[8192]{0}', space=vmem, size = 0x2000, scoped, tag = 'input window, operand 8, single buffered']
    #allocation12 [shape = 'u8[8192]{0}', space=vmem, size = 0x2000, scoped, tag = 'input window, operand 10, single buffered']
    #allocation13 [shape = 's32[1]{0}', space=sflag, size = 0x4, scoped, tag = 'scoped memory for tpu_custom_call.1']
    #allocation14 [shape = 'u8[8192]{0}', space=vmem, size = 0x2000, scoped, tag = 'output window, operand 0']
    #allocation15 [shape = 'u8[16384]{0}', space=vmem, size = 0x4000, scoped, tag = 'output window, operand 1']
    #allocation16 [shape = 's32[2]{0}', space=sflag, size = 0x8, scoped, tag = 'scoped memory for tpu_custom_call.1']
    %19 = vsyncpa [#allocation4], 0
    %s20 = scalar_lea.sflag [#allocation4], 1
    %21 = vsyncpa %s20, 0
    %22 = vsyncpa [#allocation7], 0
    %23 = vsyncpa [#allocation10], 0
    %24 = vsyncpa [#allocation13], 0
    %25 = vsyncpa [#allocation5], 0
    %s26 = scalar_lea.sflag [#allocation5], 1
    %27 = vsyncpa %s26, 0
    %28 = vsyncpa [#allocation16], 0
    %s29 = scalar_lea.sflag [#allocation16], 1
    %30 = vsyncpa %s29, 0
    loop: start=0, step=1, limit=4
    $region2: #{tpu_custom_call.1} parent=1 // loop_pre_header
      _
    $region3: #{tpu_custom_call.1} parent=1 // loop_header
      %s32 = sphi 0, %s36
      %p33 = scmp.ge.s32.totalorder %s32, 4
      %s42 = sphi 0, %s44
      %s45 = sphi 0, %s42
      %s46 = sphi 0, %s45
      %s62 = sphi 0, %s46
      %s68 = sphi 0, %s70
      %s71 = sphi 0, %s68
      %s72 = sphi 0, %s71
      %s88 = sphi 0, %s72
      %s94 = sphi 0, %s96
      %s97 = sphi 0, %s94
      %s98 = sphi 0, %s97
      %s114 = sphi 0, %s98
      %s120 = sphi 0, %s122
      %s123 = sphi 0, %s120
      %s124 = sphi 0, %s123
      %s140 = sphi 0, %s124
      %s146 = sphi 0, %s148
      %s149 = sphi 0, %s146
      %s150 = sphi 0, %s149
      %s166 = sphi 0, %s150
      %s170 = sphi 0, %s170
      %s172 = sphi 0, %s170
      %s173 = sphi 0, %s172
      %s187 = sphi 0, %s173
      %s191 = sphi 0, %s191
      %s193 = sphi 0, %s191
      %s194 = sphi 0, %s193
      %s208 = sphi 0, %s194
      %s212 = sphi 0, %s212
      %s214 = sphi 0, %s212
      %s215 = sphi 0, %s214
      %s229 = sphi 0, %s215
      %s233 = sphi 0, %s233
      %s235 = sphi 0, %s233
      %s236 = sphi 0, %s235
      %s250 = sphi 0, %s236
      %s254 = sphi 0, %s254
      %s256 = sphi 0, %s254
      %s257 = sphi 0, %s256
      %s271 = sphi 0, %s257
      %s275 = sphi 0, %s275
      %s277 = sphi 0, %s275
      %s278 = sphi 0, %s277
      %s292 = sphi 0, %s278
      %s296 = sphi 0, %s296
      %s298 = sphi 0, %s296
      %s299 = sphi 0, %s298
      %s313 = sphi 0, %s299
      %s319 = sphi 0, %s321
      %s322 = sphi 0, %s319
      %s323 = sphi 0, %s322
      %s339 = sphi 0, %s323
      %s345 = sphi 0, %s347
      %s348 = sphi 0, %s345
      %s349 = sphi 0, %s348
      %s365 = sphi 0, %s349
    $region4: #{tpu_custom_call.1} parent=1 // loop_header_branch
      %35 = sbr.rel (%p33) target = $region8
    $region5: #{tpu_custom_call.1} parent=1 // loop_body
      %s37 = ssub.s32 %s32, 1
      %s38 = ssub.s32 %s32, 2
      %s39 = sadd.s32 %s32, 1
      %s40 = ssub.s32 %s32, %s39
      %p41 = scmp.eq.s32.totalorder %s40, 0
      %s43 = sadd.s32 %s42, 1
      %s44 = scalar_select %p41, %s42, %s43
      %p47 = pneg %p41
      %p48 = scmp.eq.s32.totalorder %s32, 1
      %p49 = por %p47, %p48
      %p50 = scmp.ne.s32.totalorder %s42, %s45
      %p51 = scmp.eq.s32.totalorder %s32, 0
      %p52 = por %p50, %p51
      %p53 = scmp.ne.s32.totalorder %s42, %s45
      %p54 = scmp.eq.s32.totalorder %s37, 1
      %p55 = por %p53, %p54
      %p56 = scmp.ne.s32.totalorder %s45, %s46
      %p57 = scmp.eq.s32.totalorder %s37, 0
      %p58 = por %p56, %p57
      %p59 = scmp.ne.s32.totalorder %s45, %s46
      %p60 = scmp.eq.s32.totalorder %s38, 1
      %p61 = por %p59, %p60
      %p63 = scmp.ne.s32.totalorder %s46, %s62
      %p64 = scmp.eq.s32.totalorder %s38, 0
      %p65 = por %p63, %p64
      %s66 = ssub.s32 %s32, %s39
      %p67 = scmp.eq.s32.totalorder %s66, 0
      %s69 = sadd.s32 %s68, 1
      %s70 = scalar_select %p67, %s68, %s69
      %p73 = pneg %p67
      %p74 = scmp.eq.s32.totalorder %s32, 1
      %p75 = por %p73, %p74
      %p76 = scmp.ne.s32.totalorder %s68, %s71
      %p77 = scmp.eq.s32.totalorder %s32, 0
      %p78 = por %p76, %p77
      %p79 = scmp.ne.s32.totalorder %s68, %s71
      %p80 = scmp.eq.s32.totalorder %s37, 1
      %p81 = por %p79, %p80
      %p82 = scmp.ne.s32.totalorder %s71, %s72
      %p83 = scmp.eq.s32.totalorder %s37, 0
      %p84 = por %p82, %p83
      %p85 = scmp.ne.s32.totalorder %s71, %s72
      %p86 = scmp.eq.s32.totalorder %s38, 1
      %p87 = por %p85, %p86
      %p89 = scmp.ne.s32.totalorder %s72, %s88
      %p90 = scmp.eq.s32.totalorder %s38, 0
      %p91 = por %p89, %p90
      %s92 = ssub.s32 %s32, %s39
      %p93 = scmp.eq.s32.totalorder %s92, 0
      %s95 = sadd.s32 %s94, 1
      %s96 = scalar_select %p93, %s94, %s95
      %p99 = pneg %p93
      %p100 = scmp.eq.s32.totalorder %s32, 1
      %p101 = por %p99, %p100
      %p102 = scmp.ne.s32.totalorder %s94, %s97
      %p103 = scmp.eq.s32.totalorder %s32, 0
      %p104 = por %p102, %p103
      %p105 = scmp.ne.s32.totalorder %s94, %s97
      %p106 = scmp.eq.s32.totalorder %s37, 1
      %p107 = por %p105, %p106
      %p108 = scmp.ne.s32.totalorder %s97, %s98
      %p109 = scmp.eq.s32.totalorder %s37, 0
      %p110 = por %p108, %p109
      %p111 = scmp.ne.s32.totalorder %s97, %s98
      %p112 = scmp.eq.s32.totalorder %s38, 1
      %p113 = por %p111, %p112
      %p115 = scmp.ne.s32.totalorder %s98, %s114
      %p116 = scmp.eq.s32.totalorder %s38, 0
      %p117 = por %p115, %p116
      %s118 = ssub.s32 %s32, %s39
      %p119 = scmp.eq.s32.totalorder %s118, 0
      %s121 = sadd.s32 %s120, 1
      %s122 = scalar_select %p119, %s120, %s121
      %p125 = pneg %p119
      %p126 = scmp.eq.s32.totalorder %s32, 1
      %p127 = por %p125, %p126
      %p128 = scmp.ne.s32.totalorder %s120, %s123
      %p129 = scmp.eq.s32.totalorder %s32, 0
      %p130 = por %p128, %p129
      %p131 = scmp.ne.s32.totalorder %s120, %s123
      %p132 = scmp.eq.s32.totalorder %s37, 1
      %p133 = por %p131, %p132
      %p134 = scmp.ne.s32.totalorder %s123, %s124
      %p135 = scmp.eq.s32.totalorder %s37, 0
      %p136 = por %p134, %p135
      %p137 = scmp.ne.s32.totalorder %s123, %s124
      %p138 = scmp.eq.s32.totalorder %s38, 1
      %p139 = por %p137, %p138
      %p141 = scmp.ne.s32.totalorder %s124, %s140
      %p142 = scmp.eq.s32.totalorder %s38, 0
      %p143 = por %p141, %p142
      %s144 = ssub.s32 %s32, %s39
      %p145 = scmp.eq.s32.totalorder %s144, 0
      %s147 = sadd.s32 %s146, 1
      %s148 = scalar_select %p145, %s146, %s147
      %p151 = pneg %p145
      %p152 = scmp.eq.s32.totalorder %s32, 1
      %p153 = por %p151, %p152
      %p154 = scmp.ne.s32.totalorder %s146, %s149
      %p155 = scmp.eq.s32.totalorder %s32, 0
      %p156 = por %p154, %p155
      %p157 = scmp.ne.s32.totalorder %s146, %s149
      %p158 = scmp.eq.s32.totalorder %s37, 1
      %p159 = por %p157, %p158
      %p160 = scmp.ne.s32.totalorder %s149, %s150
      %p161 = scmp.eq.s32.totalorder %s37, 0
      %p162 = por %p160, %p161
      %p163 = scmp.ne.s32.totalorder %s149, %s150
      %p164 = scmp.eq.s32.totalorder %s38, 1
      %p165 = por %p163, %p164
      %p167 = scmp.ne.s32.totalorder %s150, %s166
      %p168 = scmp.eq.s32.totalorder %s38, 0
      %p169 = por %p167, %p168
      %s171 = sadd.s32 %s170, 1
      %p174 = scmp.eq.s32.totalorder %s32, 1
      %p175 = scmp.ne.s32.totalorder %s170, %s172
      %p176 = scmp.eq.s32.totalorder %s32, 0
      %p177 = por %p175, %p176
      %p178 = scmp.ne.s32.totalorder %s170, %s172
      %p179 = scmp.eq.s32.totalorder %s37, 1
      %p180 = por %p178, %p179
      %p181 = scmp.ne.s32.totalorder %s172, %s173
      %p182 = scmp.eq.s32.totalorder %s37, 0
      %p183 = por %p181, %p182
      %p184 = scmp.ne.s32.totalorder %s172, %s173
      %p185 = scmp.eq.s32.totalorder %s38, 1
      %p186 = por %p184, %p185
      %p188 = scmp.ne.s32.totalorder %s173, %s187
      %p189 = scmp.eq.s32.totalorder %s38, 0
      %p190 = por %p188, %p189
      %s192 = sadd.s32 %s191, 1
      %p195 = scmp.eq.s32.totalorder %s32, 1
      %p196 = scmp.ne.s32.totalorder %s191, %s193
      %p197 = scmp.eq.s32.totalorder %s32, 0
      %p198 = por %p196, %p197
      %p199 = scmp.ne.s32.totalorder %s191, %s193
      %p200 = scmp.eq.s32.totalorder %s37, 1
      %p201 = por %p199, %p200
      %p202 = scmp.ne.s32.totalorder %s193, %s194
      %p203 = scmp.eq.s32.totalorder %s37, 0
      %p204 = por %p202, %p203
      %p205 = scmp.ne.s32.totalorder %s193, %s194
      %p206 = scmp.eq.s32.totalorder %s38, 1
      %p207 = por %p205, %p206
      %p209 = scmp.ne.s32.totalorder %s194, %s208
      %p210 = scmp.eq.s32.totalorder %s38, 0
      %p211 = por %p209, %p210
      %s213 = sadd.s32 %s212, 1
      %p216 = scmp.eq.s32.totalorder %s32, 1
      %p217 = scmp.ne.s32.totalorder %s212, %s214
      %p218 = scmp.eq.s32.totalorder %s32, 0
      %p219 = por %p217, %p218
      %p220 = scmp.ne.s32.totalorder %s212, %s214
      %p221 = scmp.eq.s32.totalorder %s37, 1
      %p222 = por %p220, %p221
      %p223 = scmp.ne.s32.totalorder %s214, %s215
      %p224 = scmp.eq.s32.totalorder %s37, 0
      %p225 = por %p223, %p224
      %p226 = scmp.ne.s32.totalorder %s214, %s215
      %p227 = scmp.eq.s32.totalorder %s38, 1
      %p228 = por %p226, %p227
      %p230 = scmp.ne.s32.totalorder %s215, %s229
      %p231 = scmp.eq.s32.totalorder %s38, 0
      %p232 = por %p230, %p231
      %s234 = sadd.s32 %s233, 1
      %p237 = scmp.eq.s32.totalorder %s32, 1
      %p238 = scmp.ne.s32.totalorder %s233, %s235
      %p239 = scmp.eq.s32.totalorder %s32, 0
      %p240 = por %p238, %p239
      %p241 = scmp.ne.s32.totalorder %s233, %s235
      %p242 = scmp.eq.s32.totalorder %s37, 1
      %p243 = por %p241, %p242
      %p244 = scmp.ne.s32.totalorder %s235, %s236
      %p245 = scmp.eq.s32.totalorder %s37, 0
      %p246 = por %p244, %p245
      %p247 = scmp.ne.s32.totalorder %s235, %s236
      %p248 = scmp.eq.s32.totalorder %s38, 1
      %p249 = por %p247, %p248
      %p251 = scmp.ne.s32.totalorder %s236, %s250
      %p252 = scmp.eq.s32.totalorder %s38, 0
      %p253 = por %p251, %p252
      %s255 = sadd.s32 %s254, 1
      %p258 = scmp.eq.s32.totalorder %s32, 1
      %p259 = scmp.ne.s32.totalorder %s254, %s256
      %p260 = scmp.eq.s32.totalorder %s32, 0
      %p261 = por %p259, %p260
      %p262 = scmp.ne.s32.totalorder %s254, %s256
      %p263 = scmp.eq.s32.totalorder %s37, 1
      %p264 = por %p262, %p263
      %p265 = scmp.ne.s32.totalorder %s256, %s257
      %p266 = scmp.eq.s32.totalorder %s37, 0
      %p267 = por %p265, %p266
      %p268 = scmp.ne.s32.totalorder %s256, %s257
      %p269 = scmp.eq.s32.totalorder %s38, 1
      %p270 = por %p268, %p269
      %p272 = scmp.ne.s32.totalorder %s257, %s271
      %p273 = scmp.eq.s32.totalorder %s38, 0
      %p274 = por %p272, %p273
      %s276 = sadd.s32 %s275, 1
      %p279 = scmp.eq.s32.totalorder %s32, 1
      %p280 = scmp.ne.s32.totalorder %s275, %s277
      %p281 = scmp.eq.s32.totalorder %s32, 0
      %p282 = por %p280, %p281
      %p283 = scmp.ne.s32.totalorder %s275, %s277
      %p284 = scmp.eq.s32.totalorder %s37, 1
      %p285 = por %p283, %p284
      %p286 = scmp.ne.s32.totalorder %s277, %s278
      %p287 = scmp.eq.s32.totalorder %s37, 0
      %p288 = por %p286, %p287
      %p289 = scmp.ne.s32.totalorder %s277, %s278
      %p290 = scmp.eq.s32.totalorder %s38, 1
      %p291 = por %p289, %p290
      %p293 = scmp.ne.s32.totalorder %s278, %s292
      %p294 = scmp.eq.s32.totalorder %s38, 0
      %p295 = por %p293, %p294
      %s297 = sadd.s32 %s296, 1
      %p300 = scmp.eq.s32.totalorder %s32, 1
      %p301 = scmp.ne.s32.totalorder %s296, %s298
      %p302 = scmp.eq.s32.totalorder %s32, 0
      %p303 = por %p301, %p302
      %p304 = scmp.ne.s32.totalorder %s296, %s298
      %p305 = scmp.eq.s32.totalorder %s37, 1
      %p306 = por %p304, %p305
      %p307 = scmp.ne.s32.totalorder %s298, %s299
      %p308 = scmp.eq.s32.totalorder %s37, 0
      %p309 = por %p307, %p308
      %p310 = scmp.ne.s32.totalorder %s298, %s299
      %p311 = scmp.eq.s32.totalorder %s38, 1
      %p312 = por %p310, %p311
      %p314 = scmp.ne.s32.totalorder %s299, %s313
      %p315 = scmp.eq.s32.totalorder %s38, 0
      %p316 = por %p314, %p315
      %s317 = ssub.s32 %s32, %s39
      %p318 = scmp.eq.s32.totalorder %s317, 0
      %s320 = sadd.s32 %s319, 1
      %s321 = scalar_select %p318, %s319, %s320
      %p324 = pneg %p318
      %p325 = scmp.eq.s32.totalorder %s32, 1
      %p326 = por %p324, %p325
      %p327 = scmp.ne.s32.totalorder %s319, %s322
      %p328 = scmp.eq.s32.totalorder %s32, 0
      %p329 = por %p327, %p328
      %p330 = scmp.ne.s32.totalorder %s319, %s322
      %p331 = scmp.eq.s32.totalorder %s37, 1
      %p332 = por %p330, %p331
      %p333 = scmp.ne.s32.totalorder %s322, %s323
      %p334 = scmp.eq.s32.totalorder %s37, 0
      %p335 = por %p333, %p334
      %p336 = scmp.ne.s32.totalorder %s322, %s323
      %p337 = scmp.eq.s32.totalorder %s38, 1
      %p338 = por %p336, %p337
      %p340 = scmp.ne.s32.totalorder %s323, %s339
      %p341 = scmp.eq.s32.totalorder %s38, 0
      %p342 = por %p340, %p341
      %s343 = ssub.s32 %s32, %s39
      %p344 = scmp.eq.s32.totalorder %s343, 0
      %s346 = sadd.s32 %s345, 1
      %s347 = scalar_select %p344, %s345, %s346
      %p350 = pneg %p344
      %p351 = scmp.eq.s32.totalorder %s32, 1
      %p352 = por %p350, %p351
      %p353 = scmp.ne.s32.totalorder %s345, %s348
      %p354 = scmp.eq.s32.totalorder %s32, 0
      %p355 = por %p353, %p354
      %p356 = scmp.ne.s32.totalorder %s345, %s348
      %p357 = scmp.eq.s32.totalorder %s37, 1
      %p358 = por %p356, %p357
      %p359 = scmp.ne.s32.totalorder %s348, %s349
      %p360 = scmp.eq.s32.totalorder %s37, 0
      %p361 = por %p359, %p360
      %p362 = scmp.ne.s32.totalorder %s348, %s349
      %p363 = scmp.eq.s32.totalorder %s38, 1
      %p364 = por %p362, %p363
      %p366 = scmp.ne.s32.totalorder %s349, %s365
      %p367 = scmp.eq.s32.totalorder %s38, 0
      %p368 = por %p366, %p367
      %p369 = scmp.le.s32.totalorder 1, %s32
      %p370 = scmp.lt.s32.totalorder %s32, 3
      %p371 = pnand %p369, %p370
      %p372 = pneg %p371
      // Predicated region
      $region9: #{tpu_custom_call.1} parent=5 // pred_check
        _
      $region10: #{tpu_custom_call.1} parent=5 // pred_check_branch
        %374 = sbr.rel (%p371) target = $region12
      $region11: #{tpu_custom_call.1} parent=5 // pred_region
        %s375 = ssub.s32 %s32, 1
        // Predicated region
        $region13: #{tpu_custom_call.1} parent=11 // pred_check
          %p376 = pneg %p183
        $region14: #{tpu_custom_call.1} parent=11 // pred_check_branch
          %378 = sbr.rel (%p376) target = $region16
        $region15: #{tpu_custom_call.1} parent=11 // pred_region
          %s380 = ssub.s32 256, 256
          %381 = vsyncadd [#allocation7], %s380
          %s382 = sshll.u32 [#allocation6], 4
          %s383 = int_to_ptr.vmem [resolvable:$true] %s382
          %388 = dma.hbm_to_vmem [thread:$0]  %s5, 256, %s383, [#allocation7], 128, 128, 8
        $region16: #{tpu_custom_call.1} parent=11 // pred_fallthru
          _
        // Predicated region
        $region17: #{tpu_custom_call.1} parent=11 // pred_check
          %p389 = pneg %p204
        $region18: #{tpu_custom_call.1} parent=11 // pred_check_branch
          %391 = sbr.rel (%p389) target = $region20
        $region19: #{tpu_custom_call.1} parent=11 // pred_region
          %s393 = ssub.s32 16, 16
          %394 = vsyncadd [#allocation7], %s393
          %s396 = sshll.u32 [#allocation8], 4
          %s397 = int_to_ptr.vmem [resolvable:$true] %s396
          %399 = dma.hbm_to_vmem [thread:$0]  %s6, 16, %s397, [#allocation7]
        $region20: #{tpu_custom_call.1} parent=11 // pred_fallthru
          _
        // Predicated region
        $region21: #{tpu_custom_call.1} parent=11 // pred_check
          %p400 = pneg %p225
        $region22: #{tpu_custom_call.1} parent=11 // pred_check_branch
          %402 = sbr.rel (%p400) target = $region24
        $region23: #{tpu_custom_call.1} parent=11 // pred_region
          %s404 = ssub.s32 256, 256
          %405 = vsyncadd [#allocation10], %s404
          %s406 = sshll.u32 [#allocation9], 4
          %s407 = int_to_ptr.vmem [resolvable:$true] %s406
          %412 = dma.hbm_to_vmem [thread:$0]  %s7, 256, %s407, [#allocation10], 64, 64, 4
        $region24: #{tpu_custom_call.1} parent=11 // pred_fallthru
          _
        // Predicated region
        $region25: #{tpu_custom_call.1} parent=11 // pred_check
          %p413 = pneg %p246
        $region26: #{tpu_custom_call.1} parent=11 // pred_check_branch
          %415 = sbr.rel (%p413) target = $region28
        $region27: #{tpu_custom_call.1} parent=11 // pred_region
          %s417 = ssub.s32 256, 256
          %418 = vsyncadd [#allocation10], %s417
          %s419 = sshll.u32 [#allocation11], 4
          %s420 = int_to_ptr.vmem [resolvable:$true] %s419
          %425 = dma.hbm_to_vmem [thread:$0]  %s8, 256, %s420, [#allocation10], 64, 64, 4
        $region28: #{tpu_custom_call.1} parent=11 // pred_fallthru
          _
        // Predicated region
        $region29: #{tpu_custom_call.1} parent=11 // pred_check
          %p426 = pneg %p267
        $region30: #{tpu_custom_call.1} parent=11 // pred_check_branch
          %428 = sbr.rel (%p426) target = $region32
        $region31: #{tpu_custom_call.1} parent=11 // pred_region
          _
        $region32: #{tpu_custom_call.1} parent=11 // pred_fallthru
          _
        // Predicated region
        $region33: #{tpu_custom_call.1} parent=11 // pred_check
          %p429 = pneg %p288
        $region34: #{tpu_custom_call.1} parent=11 // pred_check_branch
          %431 = sbr.rel (%p429) target = $region36
        $region35: #{tpu_custom_call.1} parent=11 // pred_region
          %s433 = ssub.s32 256, 256
          %434 = vsyncadd [#allocation13], %s433
          %s435 = sshll.u32 [#allocation12], 4
          %s436 = int_to_ptr.vmem [resolvable:$true] %s435
          %441 = dma.hbm_to_vmem [thread:$0]  %s10, 256, %s436, [#allocation13], 64, 64, 4
        $region36: #{tpu_custom_call.1} parent=11 // pred_fallthru
          _
        // Predicated region
        $region37: #{tpu_custom_call.1} parent=11 // pred_check
          %p442 = pneg %p309
        $region38: #{tpu_custom_call.1} parent=11 // pred_check_branch
          %444 = sbr.rel (%p442) target = $region40
        $region39: #{tpu_custom_call.1} parent=11 // pred_region
          _
        $region40: #{tpu_custom_call.1} parent=11 // pred_fallthru
          _
      $region12: #{tpu_custom_call.1} parent=5 // pred_fallthru
        _
      %p445 = scmp.lt.s32.totalorder %s32, 2
      // Predicated region
      $region41: #{tpu_custom_call.1} parent=5 // pred_check
        %p446 = pneg %p445
      $region42: #{tpu_custom_call.1} parent=5 // pred_check_branch
        %448 = sbr.rel (%p446) target = $region44
      $region43: #{tpu_custom_call.1} parent=5 // pred_region
        // Predicated region
        $region45: #{tpu_custom_call.1} parent=43 // pred_check
          %p449 = pneg %p52
        $region46: #{tpu_custom_call.1} parent=43 // pred_check_branch
          %451 = sbr.rel (%p449) target = $region48
        $region47: #{tpu_custom_call.1} parent=43 // pred_region
          %p452 = scmp.lt.s32.totalorder %s32, 1
          %s453 = scalar_select %p452, %s32, 1
          %s454 = smul.addr %s453, 8
          %s455 = scalar_lea.vmem %s0, %s454
        $region48: #{tpu_custom_call.1} parent=43 // pred_fallthru
          _
        // Predicated region
        $region49: #{tpu_custom_call.1} parent=43 // pred_check
          %p456 = pneg %p78
        $region50: #{tpu_custom_call.1} parent=43 // pred_check_branch
          %458 = sbr.rel (%p456) target = $region52
        $region51: #{tpu_custom_call.1} parent=43 // pred_region
          %p459 = scmp.lt.s32.totalorder %s32, 1
          %s460 = scalar_select %p459, %s32, 1
          %s461 = smul.addr %s460, 8
          %s462 = scalar_lea.vmem %s1, %s461
        $region52: #{tpu_custom_call.1} parent=43 // pred_fallthru
          _
        // Predicated region
        $region53: #{tpu_custom_call.1} parent=43 // pred_check
          %p463 = pneg %p104
        $region54: #{tpu_custom_call.1} parent=43 // pred_check_branch
          %465 = sbr.rel (%p463) target = $region56
        $region55: #{tpu_custom_call.1} parent=43 // pred_region
          %p466 = scmp.lt.s32.totalorder %s32, 1
          %s467 = scalar_select %p466, %s32, 1
          %s468 = smul.addr %s467, 8
          %s469 = scalar_lea.vmem %s2, %s468
        $region56: #{tpu_custom_call.1} parent=43 // pred_fallthru
          _
        // Predicated region
        $region57: #{tpu_custom_call.1} parent=43 // pred_check
          %p470 = pneg %p130
        $region58: #{tpu_custom_call.1} parent=43 // pred_check_branch
          %472 = sbr.rel (%p470) target = $region60
        $region59: #{tpu_custom_call.1} parent=43 // pred_region
          %s473 = sand.u32 %s120, 1
          %s474 = scalar_lea.sflag [#allocation4], %s473
          %s475 = sand.u32 %s120, 1
          %s476 = smul.addr %s475, 8
          %s477 = scalar_lea.vmem [#allocation3], %s476
          %s479 = ssub.s32 128, 128
          %480 = vsyncadd %s474, %s479
          %s481 = smul.addr %s32, 128
          %s482 = scalar_lea.hbm %s3, %s481
          %s484 = sshll.u32 %s477, 4
          %s485 = int_to_ptr.vmem [resolvable:$true] %s484
          %487 = dma.hbm_to_vmem [thread:$0]  %s482, 128, %s485, %s474
        $region60: #{tpu_custom_call.1} parent=43 // pred_fallthru
          _
        // Predicated region
        $region61: #{tpu_custom_call.1} parent=43 // pred_check
          %p488 = pneg %p156
        $region62: #{tpu_custom_call.1} parent=43 // pred_check_branch
          %490 = sbr.rel (%p488) target = $region64
        $region63: #{tpu_custom_call.1} parent=43 // pred_region
          %p491 = scmp.lt.s32.totalorder %s32, 1
          %s492 = scalar_select %p491, %s32, 1
          %s493 = scalar_lea.vmem %s4, %s492
        $region64: #{tpu_custom_call.1} parent=43 // pred_fallthru
          _
      $region44: #{tpu_custom_call.1} parent=5 // pred_fallthru
        _
      %p494 = scmp.le.s32.totalorder 1, %s32
      %p495 = scmp.lt.s32.totalorder %s32, 3
      %p496 = pnand %p494, %p495
      %p497 = pneg %p496
      // Predicated region
      $region65: #{tpu_custom_call.1} parent=5 // pred_check
        _
      $region66: #{tpu_custom_call.1} parent=5 // pred_check_branch
        %499 = sbr.rel (%p496) target = $region68
      $region67: #{tpu_custom_call.1} parent=5 // pred_region
        %s500 = ssub.s32 %s32, 1
        %s501 = sand.u32 %s123, 1
        %s502 = scalar_lea.sflag [#allocation4], %s501
        %s503 = sand.u32 %s123, 1
        %s504 = smul.addr %s503, 8
        %s505 = scalar_lea.vmem [#allocation3], %s504
        // Predicated region
        $region69: #{tpu_custom_call.1} parent=67 // pred_check
          %p506 = pneg %p136
        $region70: #{tpu_custom_call.1} parent=67 // pred_check_branch
          %508 = sbr.rel (%p506) target = $region72
        $region71: #{tpu_custom_call.1} parent=67 // pred_region
          %509 = dma.done %s502, 128
        $region72: #{tpu_custom_call.1} parent=67 // pred_fallthru
          _
        // Predicated region
        $region73: #{tpu_custom_call.1} parent=67 // pred_check
          %p510 = pneg %p183
        $region74: #{tpu_custom_call.1} parent=67 // pred_check_branch
          %512 = sbr.rel (%p510) target = $region76
        $region75: #{tpu_custom_call.1} parent=67 // pred_region
          %513 = dma.done [#allocation7], 256
        $region76: #{tpu_custom_call.1} parent=67 // pred_fallthru
          _
        // Predicated region
        $region77: #{tpu_custom_call.1} parent=67 // pred_check
          %p514 = pneg %p204
        $region78: #{tpu_custom_call.1} parent=67 // pred_check_branch
          %516 = sbr.rel (%p514) target = $region80
        $region79: #{tpu_custom_call.1} parent=67 // pred_region
          %517 = dma.done [#allocation7], 16
        $region80: #{tpu_custom_call.1} parent=67 // pred_fallthru
          _
        // Predicated region
        $region81: #{tpu_custom_call.1} parent=67 // pred_check
          %p518 = pneg %p225
        $region82: #{tpu_custom_call.1} parent=67 // pred_check_branch
          %520 = sbr.rel (%p518) target = $region84
        $region83: #{tpu_custom_call.1} parent=67 // pred_region
          %521 = dma.done [#allocation10], 256
        $region84: #{tpu_custom_call.1} parent=67 // pred_fallthru
          _
        // Predicated region
        $region85: #{tpu_custom_call.1} parent=67 // pred_check
          %p522 = pneg %p246
        $region86: #{tpu_custom_call.1} parent=67 // pred_check_branch
          %524 = sbr.rel (%p522) target = $region88
        $region87: #{tpu_custom_call.1} parent=67 // pred_region
          %525 = dma.done [#allocation10], 256
        $region88: #{tpu_custom_call.1} parent=67 // pred_fallthru
          _
        // Predicated region
        $region89: #{tpu_custom_call.1} parent=67 // pred_check
          %p526 = pneg %p288
        $region90: #{tpu_custom_call.1} parent=67 // pred_check_branch
          %528 = sbr.rel (%p526) target = $region92
        $region91: #{tpu_custom_call.1} parent=67 // pred_region
          %529 = dma.done [#allocation13], 256
        $region92: #{tpu_custom_call.1} parent=67 // pred_fallthru
          _
        %p530 = scmp.lt.s32.totalorder %s37, 1
        %s531 = scalar_select %p530, %s37, 1
        %s532 = smul.addr %s531, 8
        %s533 = scalar_lea.vmem %s0, %s532
        %p534 = pneg %p58
        %p535 = pneg %p55
        %p536 = scmp.lt.s32.totalorder %s37, 1
        %s537 = scalar_select %p536, %s37, 1
        %s538 = smul.addr %s537, 8
        %s539 = scalar_lea.vmem %s1, %s538
        %p540 = pneg %p84
        %p541 = pneg %p81
        %p542 = scmp.lt.s32.totalorder %s37, 1
        %s543 = scalar_select %p542, %s37, 1
        %s544 = smul.addr %s543, 8
        %s545 = scalar_lea.vmem %s2, %s544
        %p546 = pneg %p110
        %p547 = pneg %p107
        %s548 = sand.u32 %s123, 1
        %s549 = scalar_lea.sflag [#allocation4], %s548
        %s550 = sand.u32 %s123, 1
        %s551 = smul.addr %s550, 8
        %s552 = scalar_lea.vmem [#allocation3], %s551
        %p553 = pneg %p136
        %p554 = pneg %p133
        %p555 = scmp.lt.s32.totalorder %s37, 1
        %s556 = scalar_select %p555, %s37, 1
        %s557 = scalar_lea.vmem %s4, %s556
        %p558 = pneg %p162
        %p559 = pneg %p159
        %p560 = pneg %p183
        %p561 = pneg %p180
        %p562 = pneg %p204
        %p563 = pneg %p201
        %p564 = pneg %p225
        %p565 = pneg %p222
        %p566 = pneg %p246
        %p567 = pneg %p243
        %p568 = pneg %p267
        %p569 = pneg %p264
        %p570 = pneg %p288
        %p571 = pneg %p285
        %p572 = pneg %p309
        %p573 = pneg %p306
        %p574 = pneg %p335
        %p575 = pneg %p332
        %s576 = sand.u32 %s322, 1
        %s577 = scalar_lea.sflag [#allocation5], %s576
        %s578 = sand.u32 %s322, 1
        %s579 = smul.addr %s578, 8
        %s580 = scalar_lea.vmem [#allocation14], %s579
        %p581 = pneg %p361
        %p582 = pneg %p358
        %s583 = sand.u32 %s348, 1
        %s584 = scalar_lea.sflag [#allocation16], %s583
        %s585 = sand.u32 %s348, 1
        %s586 = smul.addr %s585, 16
        %s587 = scalar_lea.vmem [#allocation15], %s586
        %p588 = scmp.lt.s32.totalorder %s37, 1
        %s589 = scalar_select %p588, %s37, 1
        %s590 = smul.addr %s589, 8
        %s591 = scalar_lea.vmem %s0, %s590
        %p592 = scmp.lt.s32.totalorder %s37, 1
        %s593 = scalar_select %p592, %s37, 1
        %s594 = smul.addr %s593, 8
        %s595 = scalar_lea.vmem %s1, %s594
        %p596 = scmp.lt.s32.totalorder %s37, 1
        %s597 = scalar_select %p596, %s37, 1
        %s598 = smul.addr %s597, 8
        %s599 = scalar_lea.vmem %s2, %s598
        %p600 = scmp.lt.s32.totalorder %s37, 1
        %s601 = scalar_select %p600, %s37, 1
        %s602 = scalar_lea.vmem %s4, %s601
        %v604 = vld [vmem:[#allocation6] sm:$0xff]
        %v605 = vld [vmem:[#allocation6 + $0x8] sm:$0x1]
        %v606 = vld [vmem:[%s591] sm:$0xff]
        %vm607 = vcmask 261120
        %v608 = vsel %vm607, %v606, 0.0
        %609 = vadd.xlane.f32.xlu0 %v608
        %v610 = vpop.xlane.xlu0 %609
        %v611 = vrcp.pop 32.0
        %v612 = vmul.f32 %v610, %v611
        %v613 = vsub.f32 %v606, %v612
        %v614 = vmul.f32 %v613, %v613
        %v615 = vsel %vm607, %v614, 0.0
        %616 = vadd.xlane.f32.xlu0 %v615
        %v617 = vpop.xlane.xlu0 %616
        %v618 = vrcp.pop 31.0
        %v619 = vmul.f32 %v617, %v618
        %v620 = vrsqrt.pop %v619
        %v621 = vmul.f32 %v619, %v620
        %vm622 = vcmp.eq.f32.partialorder %v619, inf
        %v623 = vsel %vm622, %v619, %v621
        %vm624 = vcmp.eq.f32.partialorder %v619, 0.0
        %v625 = vand.u32 %v619, 2147483648
        %v626 = vsel %vm624, %v625, %v623
        %v627 = vlaneseq
        %v628 = vshrl.u32 %v627, 7
        %v629 = vsub.s32 0, %v628
        %v630 = vrot.slane %v604, %v629
        %v631 = vmul.f32 %v630, %v613
        %v632 = vadd.f32 %v626, 1e-06
        %v633 = vrcp.pop %v632
        %v634 = vmul.f32 1.0, %v633
        %v635 = vmul.f32 %v631, %v634
        %v636 = vlaneseq
        %v637 = vshrl.u32 %v636, 7
        %v638 = vsub.s32 1, %v637
        %v639 = vrot.slane %v604, %v638
        %v640 = vadd.f32 %v635, %v639
        %v641 = vpack.c.bf16 %v640, %v640
        %v642 = vld [vmem:[#allocation9] sm:$0xf]
        %v643 = vld [vmem:[#allocation9 + $0x4] sm:$0xf]
        %v644 = vld [vmem:[#allocation9 + $0x8] sm:$0xf]
        %v645 = vld [vmem:[#allocation9 + $0xc] sm:$0xf]
        %v646 = vlaneseq
        %v647 = vshrl.u32 %v646, 7
        %v648 = vsub.s32 2, %v647
        %v649 = vrot.slane %v604, %v648
        %v654 = vunpack.c.l.b16 %v642
        %v655 = vunpack.c.l.b16 %v643
        %v656 = vunpack.c.l.b16 %v644
        %v657 = vunpack.c.l.b16 %v645
        %v658 = vpack.c.b16 %v655, %v654
        %v659 = vpack.c.b16 %v657, %v656
        %v663 = vsel %vm607, %v641, 0
        %665 = vmatprep.subr.bf16.mxu0 0
        %666 = vmatpush1.bf16.msra.mxu0 %v658
        %667 = vmatprep.subr.bf16.mxu0 0
        %668 = vmatpush1.bf16.msra.mxu0 %v659
        %669 = vmatprep.subr.bf16.mxu0 0
        %670 = vmatpush1.bf16.msra.mxu0 0
        %671 = vmatprep.subr.bf16.mxu0 0
        %672 = vmatpush1.bf16.msra.mxu0 0
        %673 = vmatprep.subr.bf16.mxu0 0
        %674 = vmatpush1.bf16.msra.mxu0 0
        %675 = vmatprep.subr.bf16.mxu0 0
        %676 = vmatpush1.bf16.msra.mxu0 0
        %677 = vmatprep.subr.bf16.mxu0 0
        %678 = vmatpush1.bf16.msra.mxu0 0
        %679 = vmatprep.subr.bf16.mxu0 0
        %680 = vmatpush1.bf16.msra.mxu0 0
        %681 = vmatprep.subr.bf16.mxu0 0
        %682 = vmatpush1.bf16.msra.mxu0 0
        %683 = vmatprep.subr.bf16.mxu0 0
        %684 = vmatpush1.bf16.msra.mxu0 0
        %685 = vmatprep.subr.bf16.mxu0 0
        %686 = vmatpush1.bf16.msra.mxu0 0
        %687 = vmatprep.subr.bf16.mxu0 0
        %688 = vmatpush1.bf16.msra.mxu0 0
        %689 = vmatprep.subr.bf16.mxu0 0
        %690 = vmatpush1.bf16.msra.mxu0 0
        %691 = vmatprep.subr.bf16.mxu0 0
        %692 = vmatpush1.bf16.msra.mxu0 0
        %693 = vmatprep.subr.bf16.mxu0 0
        %694 = vmatpush1.bf16.msra.mxu0 0
        %695 = vmatprep.subr.bf16.mxu0 0
        %696 = vmatpush1.bf16.msra.mxu0 0
        %697 = vmatprep.mubr.bf16.mxu0 0
        %698 = vmatmul.mubr.bf16.gmra.mrb[0].mxu0 %v663
        %v699 = vpop.f32.mrb[0].mxu0
        %v700 = vadd.f32 %v649, %v699
        %v701 = vpop.f32.mrb[0].mxu0
        %v702 = vpop.f32.mrb[0].mxu0
        %v703 = vpop.f32.mrb[0].mxu0
        %704 = vdwg.mxu0
        %v705 = vld [vmem:[%s595] sm:$0xff]
        %v706 = vld [vmem:[%s599] sm:$0xff]
        %v707 = vld [vmem:[%s505] sm:$0xff]
        %v708 = vpack.c.bf16 %v706, %v705
        %v709 = vpack.c.bf16 %v707, %v707
        %v710 = vld [vmem:[#allocation11] sm:$0xf]
        %v711 = vld [vmem:[#allocation11 + $0x4] sm:$0xf]
        %v712 = vld [vmem:[#allocation11 + $0x8] sm:$0xf]
        %v713 = vld [vmem:[#allocation11 + $0xc] sm:$0xf]
        %v718 = vunpack.c.l.b16 %v710
        %v719 = vunpack.c.l.b16 %v711
        %v720 = vunpack.c.l.b16 %v712
        %v721 = vunpack.c.l.b16 %v713
        %v722 = vpack.c.b16 %v719, %v718
        %v723 = vpack.c.b16 %v721, %v720
        %v727 = vsel %vm607, %v708, 0
        %v730 = vsel %vm607, %v709, 0
        %732 = vmatprep.subr.bf16.mxu0 0
        %733 = vmatpush1.bf16.msra.mxu0 %v722
        %734 = vmatprep.subr.bf16.mxu0 0
        %735 = vmatpush1.bf16.msra.mxu0 %v723
        %736 = vmatprep.subr.bf16.mxu0 0
        %737 = vmatpush1.bf16.msra.mxu0 0
        %738 = vmatprep.subr.bf16.mxu0 0
        %739 = vmatpush1.bf16.msra.mxu0 0
        %740 = vmatprep.subr.bf16.mxu0 0
        %741 = vmatpush1.bf16.msra.mxu0 0
        %742 = vmatprep.subr.bf16.mxu0 0
        %743 = vmatpush1.bf16.msra.mxu0 0
        %744 = vmatprep.subr.bf16.mxu0 0
        %745 = vmatpush1.bf16.msra.mxu0 0
        %746 = vmatprep.subr.bf16.mxu0 0
        %747 = vmatpush1.bf16.msra.mxu0 0
        %748 = vmatprep.subr.bf16.mxu0 0
        %749 = vmatpush1.bf16.msra.mxu0 0
        %750 = vmatprep.subr.bf16.mxu0 0
        %751 = vmatpush1.bf16.msra.mxu0 0
        %752 = vmatprep.subr.bf16.mxu0 0
        %753 = vmatpush1.bf16.msra.mxu0 0
        %754 = vmatprep.subr.bf16.mxu0 0
        %755 = vmatpush1.bf16.msra.mxu0 0
        %756 = vmatprep.subr.bf16.mxu0 0
        %757 = vmatpush1.bf16.msra.mxu0 0
        %758 = vmatprep.subr.bf16.mxu0 0
        %759 = vmatpush1.bf16.msra.mxu0 0
        %760 = vmatprep.subr.bf16.mxu0 0
        %761 = vmatpush1.bf16.msra.mxu0 0
        %762 = vmatprep.subr.bf16.mxu0 0
        %763 = vmatpush1.bf16.msra.mxu0 0
        %764 = vmatprep.mubr.bf16.mxu0 0
        %765 = vmatmul.mubr.bf16.gmra.mrb[0].mxu0 %v727
        %v766 = vpop.f32.mrb[0].mxu0
        %v767 = vadd.f32 0.0, %v766
        %v768 = vpop.f32.mrb[0].mxu0
        %v769 = vpop.f32.mrb[0].mxu0
        %v770 = vadd.f32 0.0, %v769
        %v771 = vpop.f32.mrb[0].mxu0
        %772 = vmatprep.mubr.bf16.mxu0 0
        %773 = vmatmul.mubr.bf16.gmra.mrb[0].mxu0 %v730
        %v774 = vpop.f32.mrb[0].mxu0
        %v775 = vadd.f32 0.0, %v774
        %v776 = vpop.f32.mrb[0].mxu0
        %v777 = vpop.f32.mrb[0].mxu0
        %v778 = vpop.f32.mrb[0].mxu0
        %779 = vdwg.mxu0
        %v780 = vlaneseq
        %v781 = vshrl.u32 %v780, 7
        %v782 = vsub.s32 3, %v781
        %v783 = vrot.slane %v604, %v782
        %v784 = vadd.f32 %v767, %v783
        %v785 = vadd.f32 %v770, %v783
        %v786 = vadd.f32 %v775, %v783
        %v787 = vlaneseq
        %v788 = vshrl.u32 %v787, 7
        %v789 = vsub.s32 4, %v788
        %v790 = vrot.slane %v604, %v789
        %792 = vrot.lane.b32.xlu0 %v790, 32
        %v793 = vpop.permute.xlu0 %792
        %v795 = vadd.f32 %v767, %v793
        %v796 = vadd.f32 %v770, %v793
        %v797 = vadd.f32 %v775, %v793
        %v798 = vpack.c.bf16 %v700, %v700
        %v799 = vpack.c.bf16 %v785, %v784
        %v800 = vpack.c.bf16 %v786, %v786
        %v801 = vpack.c.bf16 %v796, %v795
        %v802 = vpack.c.bf16 %v797, %v797
        %v803 = vld [vmem:[%s602] sm:$0x1]
        %v804 = vsub.f32 1.0, %v803
        %v805 = vmul.f32 %v804, -1e+09
        %v807 = vlaneseq
        %v808 = vshrl.u32 %v807, 7
        %v809 = vsub.s32 0, %v808
        %v810 = vrot.slane %v805, %v809
        %vm812 = vcmask 64512
        %v814 = vsel %vm812, %v798, 0
        %v817 = vsel %vm812, %v799, 0
        %v820 = vsel %vm812, %v800, 0
        %822 = vmatprep.subr.bf16.mxu0 0
        %823 = vmatpush1.bf16.xpose.msra.mxu0 %v817
        %824 = vmatprep.subr.bf16.mxu0 0
        %825 = vmatpush1.bf16.xpose.msra.mxu0 %v820
        %826 = vmatprep.subr.bf16.mxu0 0
        %827 = vmatpush1.bf16.xpose.msra.mxu0 0
        %828 = vmatprep.subr.bf16.mxu0 0
        %829 = vmatpush1.bf16.xpose.msra.mxu0 0
        %830 = vmatprep.subr.bf16.mxu0 0
        %831 = vmatpush1.bf16.xpose.msra.mxu0 0
        %832 = vmatprep.subr.bf16.mxu0 0
        %833 = vmatpush1.bf16.xpose.msra.mxu0 0
        %834 = vmatprep.subr.bf16.mxu0 0
        %835 = vmatpush1.bf16.xpose.msra.mxu0 0
        %836 = vmatprep.subr.bf16.mxu0 0
        %837 = vmatpush1.bf16.xpose.msra.mxu0 0
        %838 = vmatprep.subr.bf16.mxu0 0
        %839 = vmatpush1.bf16.xpose.msra.mxu0 0
        %840 = vmatprep.subr.bf16.mxu0 0
        %841 = vmatpush1.bf16.xpose.msra.mxu0 0
        %842 = vmatprep.subr.bf16.mxu0 0
        %843 = vmatpush1.bf16.xpose.msra.mxu0 0
        %844 = vmatprep.subr.bf16.mxu0 0
        %845 = vmatpush1.bf16.xpose.msra.mxu0 0
        %846 = vmatprep.subr.bf16.mxu0 0
        %847 = vmatpush1.bf16.xpose.msra.mxu0 0
        %848 = vmatprep.subr.bf16.mxu0 0
        %849 = vmatpush1.bf16.xpose.msra.mxu0 0
        %850 = vmatprep.subr.bf16.mxu0 0
        %851 = vmatpush1.bf16.xpose.msra.mxu0 0
        %852 = vmatprep.subr.bf16.mxu0 0
        %853 = vmatpush1.bf16.xpose.msra.mxu0 0
        %854 = vmatprep.mubr.bf16.mxu0 0
        %855 = vmatmul.mubr.bf16.gmra.mrb[0].mxu0 %v814
        %v856 = vpop.f32.mrb[0].mxu0
        %v857 = vadd.f32 %v810, %v856
        %v858 = vpop.f32.mrb[0].mxu0
        %v859 = vpop.f32.mrb[0].mxu0
        %v860 = vpop.f32.mrb[0].mxu0
        %861 = vdwg.mxu0
        %vm862 = vcmask 195584
        %v863 = vsel %vm862, %v857, -inf
        %864 = vmax.xlane.f32.xlu0 %v863
        %v865 = vpop.xlane.xlu0 %864
        %v866 = vsub.f32 %v857, %v865
        %v867 = vmul.f32 %v866, 1.442695
        %v868 = vpow.pop %v867
        %v869 = vsel %vm862, %v868, 0.0
        %870 = vadd.xlane.f32.xlu0 %v869
        %v871 = vpop.xlane.xlu0 %870
        %v872 = vrcp.pop %v871
        %v873 = vmul.f32 %v868, %v872
        %v874 = vpack.c.bf16 %v873, %v873
        %vm875 = vcmask 191488
        %876 = vst.msk [vmem:[%s587] sm:$0xf] %vm875, %v874
        %879 = vrot.lane.b32.xlu0 %v801, 96
        %v880 = vpop.permute.xlu0 %879
        %881 = vrot.lane.b32.xlu0 %v802, 96
        %v882 = vpop.permute.xlu0 %881
        %v885 = vsel %vm862, %v874, 0
        %vm887 = vcmask 1043456
        %v889 = vsel %vm887, %v882, 0
        %891 = vmatprep.subr.bf16.mxu0 0
        %892 = vmatpush1.bf16.msra.mxu0 %v880
        %893 = vmatprep.subr.bf16.mxu0 0
        %894 = vmatpush1.bf16.msra.mxu0 %v889
        %895 = vmatprep.subr.bf16.mxu0 0
        %896 = vmatpush1.bf16.msra.mxu0 0
        %897 = vmatprep.subr.bf16.mxu0 0
        %898 = vmatpush1.bf16.msra.mxu0 0
        %899 = vmatprep.subr.bf16.mxu0 0
        %900 = vmatpush1.bf16.msra.mxu0 0
        %901 = vmatprep.subr.bf16.mxu0 0
        %902 = vmatpush1.bf16.msra.mxu0 0
        %903 = vmatprep.subr.bf16.mxu0 0
        %904 = vmatpush1.bf16.msra.mxu0 0
        %905 = vmatprep.subr.bf16.mxu0 0
        %906 = vmatpush1.bf16.msra.mxu0 0
        %907 = vmatprep.subr.bf16.mxu0 0
        %908 = vmatpush1.bf16.msra.mxu0 0
        %909 = vmatprep.subr.bf16.mxu0 0
        %910 = vmatpush1.bf16.msra.mxu0 0
        %911 = vmatprep.subr.bf16.mxu0 0
        %912 = vmatpush1.bf16.msra.mxu0 0
        %913 = vmatprep.subr.bf16.mxu0 0
        %914 = vmatpush1.bf16.msra.mxu0 0
        %915 = vmatprep.subr.bf16.mxu0 0
        %916 = vmatpush1.bf16.msra.mxu0 0
        %917 = vmatprep.subr.bf16.mxu0 0
        %918 = vmatpush1.bf16.msra.mxu0 0
        %919 = vmatprep.subr.bf16.mxu0 0
        %920 = vmatpush1.bf16.msra.mxu0 0
        %921 = vmatprep.subr.bf16.mxu0 0
        %922 = vmatpush1.bf16.msra.mxu0 0
        %923 = vmatprep.mubr.bf16.mxu0 0
        %924 = vmatmul.mubr.bf16.gmra.mrb[0].mxu0 %v885
        %v925 = vpop.f32.mrb[0].mxu0
        %v926 = vadd.f32 0.0, %v925
        %v927 = vpop.f32.mrb[0].mxu0
        %v928 = vpop.f32.mrb[0].mxu0
        %v929 = vpop.f32.mrb[0].mxu0
        %930 = vdwg.mxu0
        %931 = vst.msk [vmem:[#allocation2] sm:$0xff] %vm812, %v926
        %933 = vrot.lane.b32.xlu0 %v798, 120
        %v934 = vpop.permute.xlu0 %933
        %937 = vrot.lane.b32.xlu0 %v799, 120
        %v938 = vpop.permute.xlu0 %937
        %939 = vrot.lane.b32.xlu0 %v800, 120
        %v940 = vpop.permute.xlu0 %939
        %v942 = vsel %vm812, %v934, 0
        %v945 = vsel %vm812, %v938, 0
        %v948 = vsel %vm812, %v940, 0
        %950 = vmatprep.subr.bf16.mxu0 0
        %951 = vmatpush1.bf16.xpose.msra.mxu0 %v945
        %952 = vmatprep.subr.bf16.mxu0 0
        %953 = vmatpush1.bf16.xpose.msra.mxu0 %v948
        %954 = vmatprep.subr.bf16.mxu0 0
        %955 = vmatpush1.bf16.xpose.msra.mxu0 0
        %956 = vmatprep.subr.bf16.mxu0 0
        %957 = vmatpush1.bf16.xpose.msra.mxu0 0
        %958 = vmatprep.subr.bf16.mxu0 0
        %959 = vmatpush1.bf16.xpose.msra.mxu0 0
        %960 = vmatprep.subr.bf16.mxu0 0
        %961 = vmatpush1.bf16.xpose.msra.mxu0 0
        %962 = vmatprep.subr.bf16.mxu0 0
        %963 = vmatpush1.bf16.xpose.msra.mxu0 0
        %964 = vmatprep.subr.bf16.mxu0 0
        %965 = vmatpush1.bf16.xpose.msra.mxu0 0
        %966 = vmatprep.subr.bf16.mxu0 0
        %967 = vmatpush1.bf16.xpose.msra.mxu0 0
        %968 = vmatprep.subr.bf16.mxu0 0
        %969 = vmatpush1.bf16.xpose.msra.mxu0 0
        %970 = vmatprep.subr.bf16.mxu0 0
        %971 = vmatpush1.bf16.xpose.msra.mxu0 0
        %972 = vmatprep.subr.bf16.mxu0 0
        %973 = vmatpush1.bf16.xpose.msra.mxu0 0
        %974 = vmatprep.subr.bf16.mxu0 0
        %975 = vmatpush1.bf16.xpose.msra.mxu0 0
        %976 = vmatprep.subr.bf16.mxu0 0
        %977 = vmatpush1.bf16.xpose.msra.mxu0 0
        %978 = vmatprep.subr.bf16.mxu0 0
        %979 = vmatpush1.bf16.xpose.msra.mxu0 0
        %980 = vmatprep.subr.bf16.mxu0 0
        %981 = vmatpush1.bf16.xpose.msra.mxu0 0
        %982 = vmatprep.mubr.bf16.mxu0 0
        %983 = vmatmul.mubr.bf16.gmra.mrb[0].mxu0 %v942
        %v984 = vpop.f32.mrb[0].mxu0
        %v985 = vadd.f32 %v810, %v984
        %v986 = vpop.f32.mrb[0].mxu0
        %v987 = vpop.f32.mrb[0].mxu0
        %v988 = vpop.f32.mrb[0].mxu0
        %989 = vdwg.mxu0
        %v990 = vsel %vm862, %v985, -inf
        %991 = vmax.xlane.f32.xlu0 %v990
        %v992 = vpop.xlane.xlu0 %991
        %v993 = vsub.f32 %v985, %v992
        %v994 = vmul.f32 %v993, 1.442695
        %v995 = vpow.pop %v994
        %v996 = vsel %vm862, %v995, 0.0
        %997 = vadd.xlane.f32.xlu0 %v996
        %v998 = vpop.xlane.xlu0 %997
        %v999 = vrcp.pop %v998
        %v1000 = vmul.f32 %v995, %v999
        %v1001 = vpack.c.bf16 %v1000, %v1000
        %s1002 = scalar_lea.vmem %s587, 4 [#allocation15]
        %1003 = vst.msk [vmem:[%s1002] sm:$0xf] %vm875, %v1001
        %1004 = vrot.lane.b32.xlu0 %v801, 88
        %v1005 = vpop.permute.xlu0 %1004
        %1006 = vrot.lane.b32.xlu0 %v802, 88
        %v1007 = vpop.permute.xlu0 %1006
        %v1010 = vsel %vm862, %v1001, 0
        %v1013 = vsel %vm887, %v1007, 0
        %1015 = vmatprep.subr.bf16.mxu0 0
        %1016 = vmatpush1.bf16.msra.mxu0 %v1005
        %1017 = vmatprep.subr.bf16.mxu0 0
        %1018 = vmatpush1.bf16.msra.mxu0 %v1013
        %1019 = vmatprep.subr.bf16.mxu0 0
        %1020 = vmatpush1.bf16.msra.mxu0 0
        %1021 = vmatprep.subr.bf16.mxu0 0
        %1022 = vmatpush1.bf16.msra.mxu0 0
        %1023 = vmatprep.subr.bf16.mxu0 0
        %1024 = vmatpush1.bf16.msra.mxu0 0
        %1025 = vmatprep.subr.bf16.mxu0 0
        %1026 = vmatpush1.bf16.msra.mxu0 0
        %1027 = vmatprep.subr.bf16.mxu0 0
        %1028 = vmatpush1.bf16.msra.mxu0 0
        %1029 = vmatprep.subr.bf16.mxu0 0
        %1030 = vmatpush1.bf16.msra.mxu0 0
        %1031 = vmatprep.subr.bf16.mxu0 0
        %1032 = vmatpush1.bf16.msra.mxu0 0
        %1033 = vmatprep.subr.bf16.mxu0 0
        %1034 = vmatpush1.bf16.msra.mxu0 0
        %1035 = vmatprep.subr.bf16.mxu0 0
        %1036 = vmatpush1.bf16.msra.mxu0 0
        %1037 = vmatprep.subr.bf16.mxu0 0
        %1038 = vmatpush1.bf16.msra.mxu0 0
        %1039 = vmatprep.subr.bf16.mxu0 0
        %1040 = vmatpush1.bf16.msra.mxu0 0
        %1041 = vmatprep.subr.bf16.mxu0 0
        %1042 = vmatpush1.bf16.msra.mxu0 0
        %1043 = vmatprep.subr.bf16.mxu0 0
        %1044 = vmatpush1.bf16.msra.mxu0 0
        %1045 = vmatprep.subr.bf16.mxu0 0
        %1046 = vmatpush1.bf16.msra.mxu0 0
        %1047 = vmatprep.mubr.bf16.mxu0 0
        %1048 = vmatmul.mubr.bf16.gmra.mrb[0].mxu0 %v1010
        %v1049 = vpop.f32.mrb[0].mxu0
        %v1050 = vadd.f32 0.0, %v1049
        %v1051 = vpop.f32.mrb[0].mxu0
        %v1052 = vpop.f32.mrb[0].mxu0
        %v1053 = vpop.f32.mrb[0].mxu0
        %1054 = vdwg.mxu0
        %1056 = vrot.lane.b32.xlu0 %v1050, 8
        %v1057 = vpop.permute.xlu0 %1056
        %vm1059 = vcmask 130112
        %1060 = vst.msk [vmem:[#allocation2] sm:$0xff] %vm1059, %v1057
        %1061 = vrot.lane.b32.xlu0 %v798, 112
        %v1062 = vpop.permute.xlu0 %1061
        %1063 = vrot.lane.b32.xlu0 %v799, 112
        %v1064 = vpop.permute.xlu0 %1063
        %1065 = vrot.lane.b32.xlu0 %v800, 112
        %v1066 = vpop.permute.xlu0 %1065
        %v1068 = vsel %vm812, %v1062, 0
        %v1071 = vsel %vm812, %v1064, 0
        %v1074 = vsel %vm812, %v1066, 0
        %1076 = vmatprep.subr.bf16.mxu0 0
        %1077 = vmatpush1.bf16.xpose.msra.mxu0 %v1071
        %1078 = vmatprep.subr.bf16.mxu0 0
        %1079 = vmatpush1.bf16.xpose.msra.mxu0 %v1074
        %1080 = vmatprep.subr.bf16.mxu0 0
        %1081 = vmatpush1.bf16.xpose.msra.mxu0 0
        %1082 = vmatprep.subr.bf16.mxu0 0
        %1083 = vmatpush1.bf16.xpose.msra.mxu0 0
        %1084 = vmatprep.subr.bf16.mxu0 0
        %1085 = vmatpush1.bf16.xpose.msra.mxu0 0
        %1086 = vmatprep.subr.bf16.mxu0 0
        %1087 = vmatpush1.bf16.xpose.msra.mxu0 0
        %1088 = vmatprep.subr.bf16.mxu0 0
        %1089 = vmatpush1.bf16.xpose.msra.mxu0 0
        %1090 = vmatprep.subr.bf16.mxu0 0
        %1091 = vmatpush1.bf16.xpose.msra.mxu0 0
        %1092 = vmatprep.subr.bf16.mxu0 0
        %1093 = vmatpush1.bf16.xpose.msra.mxu0 0
        %1094 = vmatprep.subr.bf16.mxu0 0
        %1095 = vmatpush1.bf16.xpose.msra.mxu0 0
        %1096 = vmatprep.subr.bf16.mxu0 0
        %1097 = vmatpush1.bf16.xpose.msra.mxu0 0
        %1098 = vmatprep.subr.bf16.mxu0 0
        %1099 = vmatpush1.bf16.xpose.msra.mxu0 0
        %1100 = vmatprep.subr.bf16.mxu0 0
        %1101 = vmatpush1.bf16.xpose.msra.mxu0 0
        %1102 = vmatprep.subr.bf16.mxu0 0
        %1103 = vmatpush1.bf16.xpose.msra.mxu0 0
        %1104 = vmatprep.subr.bf16.mxu0 0
        %1105 = vmatpush1.bf16.xpose.msra.mxu0 0
        %1106 = vmatprep.subr.bf16.mxu0 0
        %1107 = vmatpush1.bf16.xpose.msra.mxu0 0
        %1108 = vmatprep.mubr.bf16.mxu0 0
        %1109 = vmatmul.mubr.bf16.gmra.mrb[0].mxu0 %v1068
        %v1110 = vpop.f32.mrb[0].mxu0
        %v1111 = vadd.f32 %v810, %v1110
        %v1112 = vpop.f32.mrb[0].mxu0
        %v1113 = vpop.f32.mrb[0].mxu0
        %v1114 = vpop.f32.mrb[0].mxu0
        %1115 = vdwg.mxu0
        %v1116 = vsel %vm862, %v1111, -inf
        %1117 = vmax.xlane.f32.xlu0 %v1116
        %v1118 = vpop.xlane.xlu0 %1117
        %v1119 = vsub.f32 %v1111, %v1118
        %v1120 = vmul.f32 %v1119, 1.442695
        %v1121 = vpow.pop %v1120
        %v1122 = vsel %vm862, %v1121, 0.0
        %1123 = vadd.xlane.f32.xlu0 %v1122
        %v1124 = vpop.xlane.xlu0 %1123
        %v1125 = vrcp.pop %v1124
        %v1126 = vmul.f32 %v1121, %v1125
        %v1127 = vpack.c.bf16 %v1126, %v1126
        %s1128 = scalar_lea.vmem %s587, 8 [#allocation15]
        %1129 = vst.msk [vmem:[%s1128] sm:$0xf] %vm875, %v1127
        %1130 = vrot.lane.b32.xlu0 %v801, 80
        %v1131 = vpop.permute.xlu0 %1130
        %1132 = vrot.lane.b32.xlu0 %v802, 80
        %v1133 = vpop.permute.xlu0 %1132
        %v1136 = vsel %vm862, %v1127, 0
        %v1139 = vsel %vm887, %v1133, 0
        %1141 = vmatprep.subr.bf16.mxu0 0
        %1142 = vmatpush1.bf16.msra.mxu0 %v1131
        %1143 = vmatprep.subr.bf16.mxu0 0
        %1144 = vmatpush1.bf16.msra.mxu0 %v1139
        %1145 = vmatprep.subr.bf16.mxu0 0
        %1146 = vmatpush1.bf16.msra.mxu0 0
        %1147 = vmatprep.subr.bf16.mxu0 0
        %1148 = vmatpush1.bf16.msra.mxu0 0
        %1149 = vmatprep.subr.bf16.mxu0 0
        %1150 = vmatpush1.bf16.msra.mxu0 0
        %1151 = vmatprep.subr.bf16.mxu0 0
        %1152 = vmatpush1.bf16.msra.mxu0 0
        %1153 = vmatprep.subr.bf16.mxu0 0
        %1154 = vmatpush1.bf16.msra.mxu0 0
        %1155 = vmatprep.subr.bf16.mxu0 0
        %1156 = vmatpush1.bf16.msra.mxu0 0
        %1157 = vmatprep.subr.bf16.mxu0 0
        %1158 = vmatpush1.bf16.msra.mxu0 0
        %1159 = vmatprep.subr.bf16.mxu0 0
        %1160 = vmatpush1.bf16.msra.mxu0 0
        %1161 = vmatprep.subr.bf16.mxu0 0
        %1162 = vmatpush1.bf16.msra.mxu0 0
        %1163 = vmatprep.subr.bf16.mxu0 0
        %1164 = vmatpush1.bf16.msra.mxu0 0
        %1165 = vmatprep.subr.bf16.mxu0 0
        %1166 = vmatpush1.bf16.msra.mxu0 0
        %1167 = vmatprep.subr.bf16.mxu0 0
        %1168 = vmatpush1.bf16.msra.mxu0 0
        %1169 = vmatprep.subr.bf16.mxu0 0
        %1170 = vmatpush1.bf16.msra.mxu0 0
        %1171 = vmatprep.subr.bf16.mxu0 0
        %1172 = vmatpush1.bf16.msra.mxu0 0
        %1173 = vmatprep.mubr.bf16.mxu0 0
        %1174 = vmatmul.mubr.bf16.gmra.mrb[0].mxu0 %v1136
        %v1175 = vpop.f32.mrb[0].mxu0
        %v1176 = vadd.f32 0.0, %v1175
        %v1177 = vpop.f32.mrb[0].mxu0
        %v1178 = vpop.f32.mrb[0].mxu0
        %v1179 = vpop.f32.mrb[0].mxu0
        %1180 = vdwg.mxu0
        %1182 = vrot.lane.b32.xlu0 %v1176, 16
        %v1183 = vpop.permute.xlu0 %1182
        %vm1185 = vcmask 195712
        %1186 = vst.msk [vmem:[#allocation2] sm:$0xff] %vm1185, %v1183
        %1187 = vrot.lane.b32.xlu0 %v798, 104
        %v1188 = vpop.permute.xlu0 %1187
        %1189 = vrot.lane.b32.xlu0 %v799, 104
        %v1190 = vpop.permute.xlu0 %1189
        %1191 = vrot.lane.b32.xlu0 %v800, 104
        %v1192 = vpop.permute.xlu0 %1191
        %v1194 = vsel %vm812, %v1188, 0
        %v1197 = vsel %vm812, %v1190, 0
        %v1200 = vsel %vm812, %v1192, 0
        %1202 = vmatprep.subr.bf16.mxu0 0
        %1203 = vmatpush1.bf16.xpose.msra.mxu0 %v1197
        %1204 = vmatprep.subr.bf16.mxu0 0
        %1205 = vmatpush1.bf16.xpose.msra.mxu0 %v1200
        %1206 = vmatprep.subr.bf16.mxu0 0
        %1207 = vmatpush1.bf16.xpose.msra.mxu0 0
        %1208 = vmatprep.subr.bf16.mxu0 0
        %1209 = vmatpush1.bf16.xpose.msra.mxu0 0
        %1210 = vmatprep.subr.bf16.mxu0 0
        %1211 = vmatpush1.bf16.xpose.msra.mxu0 0
        %1212 = vmatprep.subr.bf16.mxu0 0
        %1213 = vmatpush1.bf16.xpose.msra.mxu0 0
        %1214 = vmatprep.subr.bf16.mxu0 0
        %1215 = vmatpush1.bf16.xpose.msra.mxu0 0
        %1216 = vmatprep.subr.bf16.mxu0 0
        %1217 = vmatpush1.bf16.xpose.msra.mxu0 0
        %1218 = vmatprep.subr.bf16.mxu0 0
        %1219 = vmatpush1.bf16.xpose.msra.mxu0 0
        %1220 = vmatprep.subr.bf16.mxu0 0
        %1221 = vmatpush1.bf16.xpose.msra.mxu0 0
        %1222 = vmatprep.subr.bf16.mxu0 0
        %1223 = vmatpush1.bf16.xpose.msra.mxu0 0
        %1224 = vmatprep.subr.bf16.mxu0 0
        %1225 = vmatpush1.bf16.xpose.msra.mxu0 0
        %1226 = vmatprep.subr.bf16.mxu0 0
        %1227 = vmatpush1.bf16.xpose.msra.mxu0 0
        %1228 = vmatprep.subr.bf16.mxu0 0
        %1229 = vmatpush1.bf16.xpose.msra.mxu0 0
        %1230 = vmatprep.subr.bf16.mxu0 0
        %1231 = vmatpush1.bf16.xpose.msra.mxu0 0
        %1232 = vmatprep.subr.bf16.mxu0 0
        %1233 = vmatpush1.bf16.xpose.msra.mxu0 0
        %1234 = vmatprep.mubr.bf16.mxu0 0
        %1235 = vmatmul.mubr.bf16.gmra.mrb[0].mxu0 %v1194
        %v1236 = vpop.f32.mrb[0].mxu0
        %v1237 = vadd.f32 %v810, %v1236
        %v1238 = vpop.f32.mrb[0].mxu0
        %v1239 = vpop.f32.mrb[0].mxu0
        %v1240 = vpop.f32.mrb[0].mxu0
        %1241 = vdwg.mxu0
        %v1242 = vsel %vm862, %v1237, -inf
        %1243 = vmax.xlane.f32.xlu0 %v1242
        %v1244 = vpop.xlane.xlu0 %1243
        %v1245 = vsub.f32 %v1237, %v1244
        %v1246 = vmul.f32 %v1245, 1.442695
        %v1247 = vpow.pop %v1246
        %v1248 = vsel %vm862, %v1247, 0.0
        %1249 = vadd.xlane.f32.xlu0 %v1248
        %v1250 = vpop.xlane.xlu0 %1249
        %v1251 = vrcp.pop %v1250
        %v1252 = vmul.f32 %v1247, %v1251
        %v1253 = vpack.c.bf16 %v1252, %v1252
        %s1254 = scalar_lea.vmem %s587, 12 [#allocation15]
        %1255 = vst.msk [vmem:[%s1254] sm:$0xf] %vm875, %v1253
        %1256 = vrot.lane.b32.xlu0 %v801, 72
        %v1257 = vpop.permute.xlu0 %1256
        %1258 = vrot.lane.b32.xlu0 %v802, 72
        %v1259 = vpop.permute.xlu0 %1258
        %v1262 = vsel %vm862, %v1253, 0
        %v1265 = vsel %vm887, %v1259, 0
        %1267 = vmatprep.subr.bf16.mxu0 0
        %1268 = vmatpush1.bf16.msra.mxu0 %v1257
        %1269 = vmatprep.subr.bf16.mxu0 0
        %1270 = vmatpush1.bf16.msra.mxu0 %v1265
        %1271 = vmatprep.subr.bf16.mxu0 0
        %1272 = vmatpush1.bf16.msra.mxu0 0
        %1273 = vmatprep.subr.bf16.mxu0 0
        %1274 = vmatpush1.bf16.msra.mxu0 0
        %1275 = vmatprep.subr.bf16.mxu0 0
        %1276 = vmatpush1.bf16.msra.mxu0 0
        %1277 = vmatprep.subr.bf16.mxu0 0
        %1278 = vmatpush1.bf16.msra.mxu0 0
        %1279 = vmatprep.subr.bf16.mxu0 0
        %1280 = vmatpush1.bf16.msra.mxu0 0
        %1281 = vmatprep.subr.bf16.mxu0 0
        %1282 = vmatpush1.bf16.msra.mxu0 0
        %1283 = vmatprep.subr.bf16.mxu0 0
        %1284 = vmatpush1.bf16.msra.mxu0 0
        %1285 = vmatprep.subr.bf16.mxu0 0
        %1286 = vmatpush1.bf16.msra.mxu0 0
        %1287 = vmatprep.subr.bf16.mxu0 0
        %1288 = vmatpush1.bf16.msra.mxu0 0
        %1289 = vmatprep.subr.bf16.mxu0 0
        %1290 = vmatpush1.bf16.msra.mxu0 0
        %1291 = vmatprep.subr.bf16.mxu0 0
        %1292 = vmatpush1.bf16.msra.mxu0 0
        %1293 = vmatprep.subr.bf16.mxu0 0
        %1294 = vmatpush1.bf16.msra.mxu0 0
        %1295 = vmatprep.subr.bf16.mxu0 0
        %1296 = vmatpush1.bf16.msra.mxu0 0
        %1297 = vmatprep.subr.bf16.mxu0 0
        %1298 = vmatpush1.bf16.msra.mxu0 0
        %1299 = vmatprep.mubr.bf16.mxu0 0
        %1300 = vmatmul.mubr.bf16.gmra.mrb[0].mxu0 %v1262
        %v1301 = vpop.f32.mrb[0].mxu0
        %v1302 = vadd.f32 0.0, %v1301
        %v1303 = vpop.f32.mrb[0].mxu0
        %v1304 = vpop.f32.mrb[0].mxu0
        %v1305 = vpop.f32.mrb[0].mxu0
        %1306 = vdwg.mxu0
        %1308 = vrot.lane.b32.xlu0 %v1302, 24
        %v1309 = vpop.permute.xlu0 %1308
        %vm1311 = vcmask 261312
        %1312 = vst.msk [vmem:[#allocation2] sm:$0xff] %vm1311, %v1309
        %v1313 = vld [vmem:[#allocation2] sm:$0xff]
        %v1314 = vpack.c.bf16 %v1313, %v1313
        %v1315 = vld [vmem:[%s9] sm:$0xf]
        %v1316 = vld [vmem:[%s9 + $0x4] sm:$0xf]
        %v1317 = vld [vmem:[%s9 + $0x8] sm:$0xf]
        %v1318 = vld [vmem:[%s9 + $0xc] sm:$0xf]
        %v1319 = vlaneseq
        %v1320 = vshrl.u32 %v1319, 7
        %v1321 = vsub.s32 5, %v1320
        %v1322 = vrot.slane %v604, %v1321
        %v1327 = vunpack.c.l.b16 %v1315
        %v1328 = vunpack.c.l.b16 %v1316
        %v1329 = vunpack.c.l.b16 %v1317
        %v1330 = vunpack.c.l.b16 %v1318
        %v1331 = vpack.c.b16 %v1328, %v1327
        %v1332 = vpack.c.b16 %v1330, %v1329
        %v1336 = vsel %vm607, %v1314, 0
        %1338 = vmatprep.subr.bf16.mxu0 0
        %1339 = vmatpush1.bf16.msra.mxu0 %v1331
        %1340 = vmatprep.subr.bf16.mxu0 0
        %1341 = vmatpush1.bf16.msra.mxu0 %v1332
        %1342 = vmatprep.subr.bf16.mxu0 0
        %1343 = vmatpush1.bf16.msra.mxu0 0
        %1344 = vmatprep.subr.bf16.mxu0 0
        %1345 = vmatpush1.bf16.msra.mxu0 0
        %1346 = vmatprep.subr.bf16.mxu0 0
        %1347 = vmatpush1.bf16.msra.mxu0 0
        %1348 = vmatprep.subr.bf16.mxu0 0
        %1349 = vmatpush1.bf16.msra.mxu0 0
        %1350 = vmatprep.subr.bf16.mxu0 0
        %1351 = vmatpush1.bf16.msra.mxu0 0
        %1352 = vmatprep.subr.bf16.mxu0 0
        %1353 = vmatpush1.bf16.msra.mxu0 0
        %1354 = vmatprep.subr.bf16.mxu0 0
        %1355 = vmatpush1.bf16.msra.mxu0 0
        %1356 = vmatprep.subr.bf16.mxu0 0
        %1357 = vmatpush1.bf16.msra.mxu0 0
        %1358 = vmatprep.subr.bf16.mxu0 0
        %1359 = vmatpush1.bf16.msra.mxu0 0
        %1360 = vmatprep.subr.bf16.mxu0 0
        %1361 = vmatpush1.bf16.msra.mxu0 0
        %1362 = vmatprep.subr.bf16.mxu0 0
        %1363 = vmatpush1.bf16.msra.mxu0 0
        %1364 = vmatprep.subr.bf16.mxu0 0
        %1365 = vmatpush1.bf16.msra.mxu0 0
        %1366 = vmatprep.subr.bf16.mxu0 0
        %1367 = vmatpush1.bf16.msra.mxu0 0
        %1368 = vmatprep.subr.bf16.mxu0 0
        %1369 = vmatpush1.bf16.msra.mxu0 0
        %1370 = vmatprep.mubr.bf16.mxu0 0
        %1371 = vmatmul.mubr.bf16.gmra.mrb[0].mxu0 %v1336
        %v1372 = vpop.f32.mrb[0].mxu0
        %v1373 = vadd.f32 %v1322, %v1372
        %v1374 = vpop.f32.mrb[0].mxu0
        %v1375 = vpop.f32.mrb[0].mxu0
        %v1376 = vpop.f32.mrb[0].mxu0
        %1377 = vdwg.mxu0
        %v1378 = vadd.f32 %v1373, %v606
        %v1379 = vsel %vm607, %v1378, 0.0
        %1380 = vadd.xlane.f32.xlu0 %v1379
        %v1381 = vpop.xlane.xlu0 %1380
        %v1382 = vmul.f32 %v1381, %v611
        %v1383 = vsub.f32 %v1378, %v1382
        %v1384 = vmul.f32 %v1383, %v1383
        %v1385 = vsel %vm607, %v1384, 0.0
        %1386 = vadd.xlane.f32.xlu0 %v1385
        %v1387 = vpop.xlane.xlu0 %1386
        %v1388 = vmul.f32 %v1387, %v611
        %v1389 = vlaneseq
        %v1390 = vshrl.u32 %v1389, 7
        %v1391 = vsub.s32 6, %v1390
        %v1392 = vrot.slane %v604, %v1391
        %v1393 = vmul.f32 %v1392, %v1383
        %v1394 = vadd.f32 %v1388, 1e-06
        %v1395 = vrsqrt.pop %v1394
        %v1396 = vmul.f32 %v1393, %v1395
        %v1397 = vlaneseq
        %v1398 = vshrl.u32 %v1397, 7
        %v1399 = vsub.s32 7, %v1398
        %v1400 = vrot.slane %v604, %v1399
        %v1401 = vadd.f32 %v1396, %v1400
        %v1402 = vpack.c.bf16 %v1401, %v1401
        %v1403 = vld [vmem:[#allocation12] sm:$0xf]
        %v1404 = vld [vmem:[#allocation12 + $0x4] sm:$0xf]
        %v1405 = vld [vmem:[#allocation12 + $0x8] sm:$0xf]
        %v1406 = vld [vmem:[#allocation12 + $0xc] sm:$0xf]
        %v1407 = vld [vmem:[#allocation8] sm:$0x1]
        %v1409 = vlaneseq
        %v1410 = vshrl.u32 %v1409, 7
        %v1411 = vsub.s32 0, %v1410
        %v1412 = vrot.slane %v1407, %v1411
        %v1418 = vunpack.c.l.b16 %v1403
        %v1419 = vunpack.c.l.b16 %v1404
        %v1420 = vunpack.c.l.b16 %v1405
        %v1421 = vunpack.c.l.b16 %v1406
        %v1422 = vpack.c.b16 %v1419, %v1418
        %v1423 = vpack.c.b16 %v1421, %v1420
        %v1427 = vsel %vm607, %v1402, 0
        %1429 = vmatprep.subr.bf16.mxu0 0
        %1430 = vmatpush1.bf16.msra.mxu0 %v1422
        %1431 = vmatprep.subr.bf16.mxu0 0
        %1432 = vmatpush1.bf16.msra.mxu0 %v1423
        %1433 = vmatprep.subr.bf16.mxu0 0
        %1434 = vmatpush1.bf16.msra.mxu0 0
        %1435 = vmatprep.subr.bf16.mxu0 0
        %1436 = vmatpush1.bf16.msra.mxu0 0
        %1437 = vmatprep.subr.bf16.mxu0 0
        %1438 = vmatpush1.bf16.msra.mxu0 0
        %1439 = vmatprep.subr.bf16.mxu0 0
        %1440 = vmatpush1.bf16.msra.mxu0 0
        %1441 = vmatprep.subr.bf16.mxu0 0
        %1442 = vmatpush1.bf16.msra.mxu0 0
        %1443 = vmatprep.subr.bf16.mxu0 0
        %1444 = vmatpush1.bf16.msra.mxu0 0
        %1445 = vmatprep.subr.bf16.mxu0 0
        %1446 = vmatpush1.bf16.msra.mxu0 0
        %1447 = vmatprep.subr.bf16.mxu0 0
        %1448 = vmatpush1.bf16.msra.mxu0 0
        %1449 = vmatprep.subr.bf16.mxu0 0
        %1450 = vmatpush1.bf16.msra.mxu0 0
        %1451 = vmatprep.subr.bf16.mxu0 0
        %1452 = vmatpush1.bf16.msra.mxu0 0
        %1453 = vmatprep.subr.bf16.mxu0 0
        %1454 = vmatpush1.bf16.msra.mxu0 0
        %1455 = vmatprep.subr.bf16.mxu0 0
        %1456 = vmatpush1.bf16.msra.mxu0 0
        %1457 = vmatprep.subr.bf16.mxu0 0
        %1458 = vmatpush1.bf16.msra.mxu0 0
        %1459 = vmatprep.subr.bf16.mxu0 0
        %1460 = vmatpush1.bf16.msra.mxu0 0
        %1461 = vmatprep.mubr.bf16.mxu0 0
        %1462 = vmatmul.mubr.bf16.gmra.mrb[0].mxu0 %v1427
        %v1463 = vpop.f32.mrb[0].mxu0
        %v1464 = vadd.f32 %v1412, %v1463
        %v1465 = vpop.f32.mrb[0].mxu0
        %v1466 = vpop.f32.mrb[0].mxu0
        %v1467 = vpop.f32.mrb[0].mxu0
        %1468 = vdwg.mxu0
        %v1469 = vmul.f32 %v1464, 0.5
        %v1470 = vmul.f32 %v1464, 0.044715
        %v1471 = vmul.f32 %v1470, %v1464
        %v1472 = vmul.f32 %v1471, %v1464
        %v1473 = vadd.f32 %v1464, %v1472
        %v1474 = vmul.f32 %v1473, 0.7978846
        %v1475 = vtanh.pop %v1474
        %v1476 = vadd.f32 %v1475, 1.0
        %v1477 = vmul.f32 %v1469, %v1476
        %v1478 = vpack.c.bf16 %v1477, %v1477
        %v1479 = vld [vmem:[%s11] sm:$0xf]
        %v1480 = vld [vmem:[%s11 + $0x4] sm:$0xf]
        %v1481 = vld [vmem:[%s11 + $0x8] sm:$0xf]
        %v1482 = vld [vmem:[%s11 + $0xc] sm:$0xf]
        %v1483 = vld [vmem:[%s11 + $0x10] sm:$0xf]
        %v1484 = vld [vmem:[%s11 + $0x14] sm:$0xf]
        %v1485 = vld [vmem:[%s11 + $0x18] sm:$0xf]
        %v1486 = vld [vmem:[%s11 + $0x1c] sm:$0xf]
        %v1487 = vlaneseq
        %v1488 = vshrl.u32 %v1487, 7
        %v1489 = vsub.s32 0, %v1488
        %v1490 = vrot.slane %v605, %v1489
        %v1499 = vunpack.c.l.b16 %v1479
        %v1500 = vunpack.c.l.b16 %v1480
        %v1501 = vunpack.c.l.b16 %v1481
        %v1502 = vunpack.c.l.b16 %v1482
        %v1503 = vunpack.c.l.b16 %v1483
        %v1504 = vunpack.c.l.b16 %v1484
        %v1505 = vunpack.c.l.b16 %v1485
        %v1506 = vunpack.c.l.b16 %v1486
        %v1507 = vpack.c.b16 %v1500, %v1499
        %v1508 = vpack.c.b16 %v1502, %v1501
        %v1509 = vpack.c.b16 %v1504, %v1503
        %v1510 = vpack.c.b16 %v1506, %v1505
        %vm1515 = vcmask 523264
        %v1517 = vsel %vm1515, %v1478, 0
        %1519 = vmatprep.subr.bf16.mxu0 0
        %1520 = vmatpush1.bf16.msra.mxu0 %v1507
        %1521 = vmatprep.subr.bf16.mxu0 0
        %1522 = vmatpush1.bf16.msra.mxu0 %v1508
        %1523 = vmatprep.subr.bf16.mxu0 0
        %1524 = vmatpush1.bf16.msra.mxu0 %v1509
        %1525 = vmatprep.subr.bf16.mxu0 0
        %1526 = vmatpush1.bf16.msra.mxu0 %v1510
        %1527 = vmatprep.subr.bf16.mxu0 0
        %1528 = vmatpush1.bf16.msra.mxu0 0
        %1529 = vmatprep.subr.bf16.mxu0 0
        %1530 = vmatpush1.bf16.msra.mxu0 0
        %1531 = vmatprep.subr.bf16.mxu0 0
        %1532 = vmatpush1.bf16.msra.mxu0 0
        %1533 = vmatprep.subr.bf16.mxu0 0
        %1534 = vmatpush1.bf16.msra.mxu0 0
        %1535 = vmatprep.subr.bf16.mxu0 0
        %1536 = vmatpush1.bf16.msra.mxu0 0
        %1537 = vmatprep.subr.bf16.mxu0 0
        %1538 = vmatpush1.bf16.msra.mxu0 0
        %1539 = vmatprep.subr.bf16.mxu0 0
        %1540 = vmatpush1.bf16.msra.mxu0 0
        %1541 = vmatprep.subr.bf16.mxu0 0
        %1542 = vmatpush1.bf16.msra.mxu0 0
        %1543 = vmatprep.subr.bf16.mxu0 0
        %1544 = vmatpush1.bf16.msra.mxu0 0
        %1545 = vmatprep.subr.bf16.mxu0 0
        %1546 = vmatpush1.bf16.msra.mxu0 0
        %1547 = vmatprep.subr.bf16.mxu0 0
        %1548 = vmatpush1.bf16.msra.mxu0 0
        %1549 = vmatprep.subr.bf16.mxu0 0
        %1550 = vmatpush1.bf16.msra.mxu0 0
        %1551 = vmatprep.mubr.bf16.mxu0 0
        %1552 = vmatmul.mubr.bf16.gmra.mrb[0].mxu0 %v1517
        %v1553 = vpop.f32.mrb[0].mxu0
        %v1554 = vadd.f32 %v1490, %v1553
        %v1555 = vpop.f32.mrb[0].mxu0
        %v1556 = vpop.f32.mrb[0].mxu0
        %v1557 = vpop.f32.mrb[0].mxu0
        %1558 = vdwg.mxu0
        %v1559 = vadd.f32 %v1554, %v1378
        %1560 = vst.msk [vmem:[%s580] sm:$0xff] %vm607, %v1559
        %s1561 = sand.u32 %s322, 1
        %s1562 = scalar_lea.sflag [#allocation5], %s1561
        %s1563 = sand.u32 %s322, 1
        %s1564 = smul.addr %s1563, 8
        %s1565 = scalar_lea.vmem [#allocation14], %s1564
        %s1566 = sand.u32 %s348, 1
        %s1567 = scalar_lea.sflag [#allocation16], %s1566
        %s1568 = sand.u32 %s348, 1
        %s1569 = smul.addr %s1568, 16
        %s1570 = scalar_lea.vmem [#allocation15], %s1569
        // Predicated region
        $region93: #{tpu_custom_call.1} parent=67 // pred_check
          %p1571 = pneg %p332
        $region94: #{tpu_custom_call.1} parent=67 // pred_check_branch
          %1573 = sbr.rel (%p1571) target = $region96
        $region95: #{tpu_custom_call.1} parent=67 // pred_region
          %s1575 = ssub.s32 128, 128
          %1576 = vsyncadd %s1562, %s1575
          %s1577 = smul.addr %s37, 128
          %s1578 = scalar_lea.hbm %s12, %s1577
          %s1580 = sshll.u32 %s1565, 4
          %s1581 = int_to_ptr.vmem [resolvable:$true] %s1580
          %1583 = dma.vmem_to_hbm [thread:$0]  %s1581, 128, %s1578, %s1562
        $region96: #{tpu_custom_call.1} parent=67 // pred_fallthru
          _
        // Predicated region
        $region97: #{tpu_custom_call.1} parent=67 // pred_check
          %p1584 = pneg %p358
        $region98: #{tpu_custom_call.1} parent=67 // pred_check_branch
          %1586 = sbr.rel (%p1584) target = $region100
        $region99: #{tpu_custom_call.1} parent=67 // pred_region
          %s1588 = ssub.s32 256, 256
          %1589 = vsyncadd %s1567, %s1588
          %s1590 = smul.addr %s37, 4
          %s1591 = smul.addr %s1590, 64
          %s1592 = scalar_lea.hbm %s13, %s1591
          %s1593 = sshll.u32 %s1570, 4
          %s1594 = int_to_ptr.vmem [resolvable:$true] %s1593
          %1599 = dma.vmem_to_hbm [thread:$0]  %s1594, 256, %s1592, %s1567, 64, 64, 4
        $region100: #{tpu_custom_call.1} parent=67 // pred_fallthru
          _
      $region68: #{tpu_custom_call.1} parent=5 // pred_fallthru
        _
      %p1600 = scmp.le.s32.totalorder 2, %s32
      // Predicated region
      $region101: #{tpu_custom_call.1} parent=5 // pred_check
        %p1601 = pneg %p1600
      $region102: #{tpu_custom_call.1} parent=5 // pred_check_branch
        %1603 = sbr.rel (%p1601) target = $region104
      $region103: #{tpu_custom_call.1} parent=5 // pred_region
        %s1604 = ssub.s32 %s32, 2
        // Predicated region
        $region105: #{tpu_custom_call.1} parent=103 // pred_check
          %p1605 = pneg %p338
        $region106: #{tpu_custom_call.1} parent=103 // pred_check_branch
          %1607 = sbr.rel (%p1605) target = $region108
        $region107: #{tpu_custom_call.1} parent=103 // pred_region
          %s1608 = sand.u32 %s323, 1
          %s1609 = scalar_lea.sflag [#allocation5], %s1608
          %s1610 = sand.u32 %s323, 1
          %s1611 = smul.addr %s1610, 8
          %s1612 = scalar_lea.vmem [#allocation14], %s1611
          %1613 = dma.done %s1609, 128
        $region108: #{tpu_custom_call.1} parent=103 // pred_fallthru
          _
        // Predicated region
        $region109: #{tpu_custom_call.1} parent=103 // pred_check
          %p1614 = pneg %p364
        $region110: #{tpu_custom_call.1} parent=103 // pred_check_branch
          %1616 = sbr.rel (%p1614) target = $region112
        $region111: #{tpu_custom_call.1} parent=103 // pred_region
          %s1617 = sand.u32 %s349, 1
          %s1618 = scalar_lea.sflag [#allocation16], %s1617
          %s1619 = sand.u32 %s349, 1
          %s1620 = smul.addr %s1619, 16
          %s1621 = scalar_lea.vmem [#allocation15], %s1620
          %1622 = dma.done %s1618, 256
        $region112: #{tpu_custom_call.1} parent=103 // pred_fallthru
          _
      $region104: #{tpu_custom_call.1} parent=5 // pred_fallthru
        _
    $region6: #{tpu_custom_call.1} parent=1 // loop_footer
      %s36 = sadd.s32 1, %s32
    $region7: #{tpu_custom_call.1} parent=1 // loop_footer_branch
      %31 = sbr.rel target = $region3
    $region8: #{tpu_custom_call.1} parent=1 // loop_exit
      _
    %1623 = vsyncpa [#allocation4], 1
    %s1624 = scalar_lea.sflag [#allocation4], 1
    %1625 = vsyncpa %s1624, 1
    %1626 = vsyncpa [#allocation7], 1
    %1627 = vsyncpa [#allocation10], 1
    %1628 = vsyncpa [#allocation13], 1
    %1629 = vsyncpa [#allocation5], 1
    %s1630 = scalar_lea.sflag [#allocation5], 1
    %1631 = vsyncpa %s1630, 1
    %1632 = vsyncpa [#allocation16], 1
    %s1633 = scalar_lea.sflag [#allocation16], 1
    %1634 = vsyncpa %s1633, 1

</llo_original>
